<compile_context>
chip_gen: v6e
topology: v6e:2x2x1
jax: 0.10.0
libtpu: 0.0.40
codegen_flags: <defaults>
</compile_context>

<pallas_src>
import jax
import jax.numpy as jnp
from jax.experimental import pallas as pl
from jax.experimental.pallas import tpu as pltpu


def _make_fused_gru_kernel(num_layers, S, Bp, H):
    """Kernel running `num_layers` stacked GRU layers over all S steps.

    Ref order: x (S*Bp, D), h0 (L, Bp, H), wh (L, H, 3H), b (L, 2, 3H),
    wi_l (in_dim_l, 3H) per layer, out (Bp, S*H), hN (L, Bp, H),
    scratch gi (S*Bp, 3H), scratch seq (S*Bp, H).
    b[l, 0] = [b_ir+b_hr | b_iz+b_hz | b_in]; b[l, 1] = [0 | 0 | b_hn].
    """

    def kernel(*refs):
        x_ref, h0_ref, wh_ref, b_ref = refs[:4]
        wi_refs = refs[4:4 + num_layers]
        out_ref = refs[4 + num_layers]          # (Bp, S*H) batch-major, lane-dense
        hN_ref = refs[5 + num_layers]           # (L, Bp, H)
        gi_ref = refs[6 + num_layers]           # (S*Bp, 3H) hoisted input proj
        seq_ref = refs[7 + num_layers]          # (S*Bp, H) intermediate layer out

        def run_layer(l, seq_in, is_last):
            b_l = b_ref[l]                      # (2, 3H)
            # Hoisted fused input projection for ALL time steps: one MXU op.
            gi_ref[...] = (jnp.dot(seq_in, wi_refs[l][...],
                                   preferred_element_type=jnp.float32)
                           + b_l[0:1, :])

            wh = wh_ref[l]                      # (H, 3H) stays resident in vregs
            bhn = b_l[1:2, :]                   # zeros on r/z lanes, b_hn on n lanes

            h = h0_ref[l]                       # (Bp, H)
            # S is small & static: fully unrolled serial recurrence.
            # TODO(synk): for large S switch to lax.fori_loop(unroll=k) and chunk
            # the hoisted gi over sequence tiles to bound VMEM (v7x 64 MiB ceiling).
            for t in range(S):
                gi = gi_ref[t * Bp:(t + 1) * Bp, :]                 # (Bp, 3H)
                # ONE fused recurrent matmul per step (r|z|n packed on lanes).
                gh = jnp.dot(h, wh, preferred_element_type=jnp.float32) + bhn
                rz = jax.nn.sigmoid(gi[:, :2 * H] + gh[:, :2 * H])  # r and z at once
                r = rz[:, :H]
                z = rz[:, H:2 * H]
                n = jnp.tanh(gi[:, 2 * H:] + r * gh[:, 2 * H:])
                h = (1.0 - z) * n + z * h
                if is_last:
                    out_ref[:, t * H:(t + 1) * H] = h               # batch-major store
                else:
                    seq_ref[t * Bp:(t + 1) * Bp, :] = h             # next layer input
            hN_ref[l] = h

        cur_in = x_ref[...]
        for l in range(num_layers):
            run_layer(l, cur_in, l == num_layers - 1)
            if l + 1 < num_layers:
                cur_in = seq_ref[...]           # stays in VMEM; no HBM round-trip

    return kernel


@jax.jit
def _gru_forward(x, h0, wh_all, b_all, wi_list):
    """x: (S, B, D) f32; h0: (L, B, H) f32.
    wh_all: (L, H, 3H); b_all: (L, 2, 3H); wi_list: tuple of (in_dim_l, 3H).
    Returns (output (B, S, H), next_hidden (L, B, H))."""
    S, B, D = x.shape
    L, _, H = h0.shape
    Bp = ((B + 7) // 8) * 8                    # pad batch to full sublanes

    if Bp != B:
        x = jnp.pad(x, ((0, 0), (0, Bp - B), (0, 0)))
        h0 = jnp.pad(h0, ((0, 0), (0, Bp - B), (0, 0)))
    x2d = x.reshape(S * Bp, D)                 # time-major flattened input

    in_specs = [
        pl.BlockSpec((S * Bp, D), lambda i: (0, 0)),          # x (flattened)
        pl.BlockSpec((L, Bp, H), lambda i: (0, 0, 0)),        # h0
        pl.BlockSpec((L, H, 3 * H), lambda i: (0, 0, 0)),     # fused W_h, all layers
        pl.BlockSpec((L, 2, 3 * H), lambda i: (0, 0, 0)),     # packed biases
    ]
    for wi in wi_list:
        in_specs.append(pl.BlockSpec(wi.shape, lambda i: (0, 0)))  # fused W_i

    out_specs = [
        pl.BlockSpec((Bp, S * H), lambda i: (0, 0)),          # lane-dense output
        pl.BlockSpec((L, Bp, H), lambda i: (0, 0, 0)),        # final hidden
    ]
    scratch_shapes = [
        pltpu.VMEM((S * Bp, 3 * H), jnp.float32),             # hoisted input proj
        pltpu.VMEM((S * Bp, H), jnp.float32),                 # intermediate layer out
    ]

    # Explicit VMEM budget: inputs (double-buffered) + outputs + scratch, with
    # headroom; never below the 32 MiB default, capped at the v7x-safe 64 MiB.
    est_bytes = 4 * (2 * (x2d.size + h0.size + wh_all.size + b_all.size
                          + sum(int(w.size) for w in wi_list))
                     + Bp * S * H + L * Bp * H
                     + S * Bp * 4 * H)
    vmem_limit = int(min(max(4 * est_bytes, 32 << 20), 64 << 20))

    out2d, hN = pl.pallas_call(
        _make_fused_gru_kernel(L, S, Bp, H),
        out_shape=(jax.ShapeDtypeStruct((Bp, S * H), jnp.float32),
                   jax.ShapeDtypeStruct((L, Bp, H), jnp.float32)),
        grid_spec=pltpu.PrefetchScalarGridSpec(
            num_scalar_prefetch=0,
            grid=(1,),
            in_specs=in_specs,
            out_specs=out_specs,
            scratch_shapes=scratch_shapes),
        compiler_params=pltpu.CompilerParams(
            dimension_semantics=("arbitrary",),
            vmem_limit_bytes=vmem_limit),
    )(x2d, h0, wh_all, b_all, *wi_list)

    # Batch-major output block means no XLA transpose is needed here.
    output = out2d.reshape(Bp, S, H)[:B]                      # (B, S, H)
    next_hidden = hN[:, :B]                                   # (L, B, H)
    return output, next_hidden


class ModePallas:
    """JAX/Pallas port of Mode (GRU backbone path)."""

    def __init__(self, config):
        if not isinstance(config, dict):
            raise ValueError('Config must be a dict.')
        self.config = config
        self.sens_size = config['sens_size']
        self.hidden_size = config['hidden_size']
        self.num_rnn_layers = config['num_rnn_layers']
        self.seq_length = config['seq_length']

        H = self.hidden_size
        k = float(H) ** -0.5  # PyTorch nn.GRU init: uniform(-1/sqrt(H), 1/sqrt(H))
        key = jax.random.PRNGKey(0)

        self.params = []            # PyTorch layout (reference / export)
        wi_list, wh_list, b_list = [], [], []
        for layer in range(self.num_rnn_layers):
            in_dim = self.sens_size if layer == 0 else H
            key, k1, k2, k3, k4 = jax.random.split(key, 5)
            w_ih = jax.random.uniform(k1, (3 * H, in_dim), jnp.float32, -k, k)
            w_hh = jax.random.uniform(k2, (3 * H, H), jnp.float32, -k, k)
            b_ih = jax.random.uniform(k3, (3 * H,), jnp.float32, -k, k)
            b_hh = jax.random.uniform(k4, (3 * H,), jnp.float32, -k, k)
            self.params.append((w_ih, w_hh, b_ih, b_hh))

            # Kernel-ready fused layout (PyTorch gate order r, z, n on lanes).
            wi_list.append(jnp.transpose(w_ih))               # (in_dim, 3H)
            wh_list.append(jnp.transpose(w_hh))               # (H, 3H)
            bi = jnp.concatenate([b_ih[:2 * H] + b_hh[:2 * H],  # folded r/z biases
                                  b_ih[2 * H:]])               # b_in only
            bhn = jnp.concatenate([jnp.zeros((2 * H,), jnp.float32),
                                   b_hh[2 * H:]])              # b_hn stays inside r*()
            b_list.append(jnp.stack([bi, bhn], axis=0))        # (2, 3H)

        self._wi = tuple(wi_list)                              # per-layer fused W_i
        self._wh = jnp.stack(wh_list, axis=0)                  # (L, H, 3H)
        self._b = jnp.stack(b_list, axis=0)                    # (L, 2, 3H)

    def init_hidden(self, batch_size):
        return jnp.zeros((self.num_rnn_layers, batch_size, self.hidden_size),
                         jnp.float32)

    def forward_rnn(self, x, hidden):
        """x: (seq, batch, sens_size); hidden: (num_layers, batch, hidden).
        Returns (output (batch, seq, hidden), next_hidden (num_layers, batch, hidden))."""
        return _gru_forward(x, hidden, self._wh, self._b, self._wi)

    # forward() is abstract in the PyTorch module (raises NotImplementedError).
    def forward(self, input):
        raise NotImplementedError


def _gru_layer_ref(x, h0, w_ih, w_hh, b_ih, b_hh):
    """Pure-JAX reference GRU layer (PyTorch nn.GRU equations) for validation."""
    H = h0.shape[-1]

    def step(h, x_t):
        gi = x_t @ w_ih.T + b_ih
        gh = h @ w_hh.T + b_hh
        r = jax.nn.sigmoid(gi[:, :H] + gh[:, :H])
        z = jax.nn.sigmoid(gi[:, H:2 * H] + gh[:, H:2 * H])
        n = jnp.tanh(gi[:, 2 * H:] + r * gh[:, 2 * H:])
        h_new = (1.0 - z) * n + z * h
        return h_new, h_new

    h_fin, outs = jax.lax.scan(step, h0, x)
    return outs, h_fin


if __name__ == "__main__":
    config = {
        'sens_size': 16,
        'priv_size': 4,
        'hidden_to_pred_shape': [32],
        'hidden_to_gate_shape': [32],
        'gate_to_pred_shape': [32],
        'hidden_size': 32,
        'num_rnn_layers': 2,
        'seq_length': 8,
        'mode': 'base',
        'is_training': False,
        'model_type': 'gru',
    }
    model = ModePallas(config)

    batch = 4
    key = jax.random.PRNGKey(0)
    x = jax.random.normal(key, (config['seq_length'], batch, config['sens_size']),
                          jnp.float32)
    h0 = model.init_hidden(batch)

    out, next_h = model.forward_rnn(x, h0)
    out = jax.block_until_ready(out)
    next_h = jax.block_until_ready(next_h)

    # Validate against pure-JAX reference (exact nn.GRU equations).
    layer_in = x
    hs = []
    for layer in range(config['num_rnn_layers']):
        w_ih, w_hh, b_ih, b_hh = model.params[layer]
        layer_in, h_fin = _gru_layer_ref(layer_in, h0[layer], w_ih, w_hh, b_ih, b_hh)
        hs.append(h_fin)
    out_ref = jnp.transpose(layer_in, (1, 0, 2))
    next_h_ref = jnp.stack(hs, axis=0)

    assert out.shape == (batch, config['seq_length'], config['hidden_size'])
    assert next_h.shape == (config['num_rnn_layers'], batch, config['hidden_size'])
    assert jnp.allclose(out, out_ref, atol=1e-4, rtol=1e-4)
    assert jnp.allclose(next_h, next_h_ref, atol=1e-4, rtol=1e-4)

    print("KERNEL_OK")
</pallas_src>

<mosaic_0001>
module attributes {stable_mosaic.version = 11 : i64} {
  func.func @kernel(%arg0: i32, %arg1: memref<64x16xf32, #tpu.memory_space<vmem>>, %arg2: memref<2x8x32xf32, #tpu.memory_space<vmem>>, %arg3: memref<2x32x96xf32, #tpu.memory_space<vmem>>, %arg4: memref<2x2x96xf32, #tpu.memory_space<vmem>>, %arg5: memref<16x96xf32, #tpu.memory_space<vmem>>, %arg6: memref<32x96xf32, #tpu.memory_space<vmem>>, %arg7: memref<8x256xf32, #tpu.memory_space<vmem>>, %arg8: memref<2x8x32xf32, #tpu.memory_space<vmem>>, %arg9: memref<64x96xf32, #tpu.memory_space<vmem>>, %arg10: memref<64x32xf32, #tpu.memory_space<vmem>>) attributes {dimension_semantics = [#tpu.dimension_semantics<arbitrary>], iteration_bounds = array<i64: 1>, scalar_prefetch = 0 : i64, scratch_operands = 2 : i64, tpu.core_type = #tpu.core_type<tc>, window_params = [{pipeline_mode = #tpu.pipeline_mode<synchronous>, transform_indices = @transform_0, window_bounds = array<i64: 64, 16>}, {pipeline_mode = #tpu.pipeline_mode<synchronous>, transform_indices = @transform_1, window_bounds = array<i64: 2, 8, 32>}, {pipeline_mode = #tpu.pipeline_mode<synchronous>, transform_indices = @transform_2, window_bounds = array<i64: 2, 32, 96>}, {pipeline_mode = #tpu.pipeline_mode<synchronous>, transform_indices = @transform_3, window_bounds = array<i64: 2, 2, 96>}, {pipeline_mode = #tpu.pipeline_mode<synchronous>, transform_indices = @transform_4, window_bounds = array<i64: 16, 96>}, {pipeline_mode = #tpu.pipeline_mode<synchronous>, transform_indices = @transform_5, window_bounds = array<i64: 32, 96>}, {pipeline_mode = #tpu.pipeline_mode<synchronous>, transform_indices = @transform_6, window_bounds = array<i64: 8, 256>}, {pipeline_mode = #tpu.pipeline_mode<synchronous>, transform_indices = @transform_7, window_bounds = array<i64: 2, 8, 32>}]} {
    %c0 = arith.constant 0 : index
    %c0_0 = arith.constant 0 : index
    %0 = vector.load %arg1[%c0, %c0_0] : memref<64x16xf32, #tpu.memory_space<vmem>>, vector<64x16xf32>
    %c0_1 = arith.constant 0 : index
    %c0_2 = arith.constant 0 : index
    %c0_3 = arith.constant 0 : index
    %1 = vector.load %arg4[%c0_1, %c0_2, %c0_3] : memref<2x2x96xf32, #tpu.memory_space<vmem>>, vector<1x2x96xf32>
    %2 = vector.shape_cast %1 : vector<1x2x96xf32> to vector<2x96xf32>
    %c0_4 = arith.constant 0 : index
    %c0_5 = arith.constant 0 : index
    %3 = vector.load %arg5[%c0_4, %c0_5] : memref<16x96xf32, #tpu.memory_space<vmem>>, vector<16x96xf32>
    %cst = arith.constant dense<0.000000e+00> : vector<64x96xf32>
    %4 = tpu.matmul %0, %3, %cst {dimension_numbers = #tpu.dot_dimension_numbers<[1], [0], [0], [1], [0, 0, 1, 1], [], []>} : vector<64x16xf32>, vector<16x96xf32>, vector<64x96xf32> -> vector<64x96xf32>
    %5 = vector.extract_strided_slice %2 {offsets = [0, 0], sizes = [1, 96], strides = [1, 1]} : vector<2x96xf32> to vector<1x96xf32>
    %6 = vector.broadcast %5 : vector<1x96xf32> to vector<64x96xf32>
    %7 = arith.addf %4, %6 : vector<64x96xf32>
    %c0_6 = arith.constant 0 : index
    %c0_7 = arith.constant 0 : index
    %8 = vector.load %arg9[%c0_6, %c0_7] : memref<64x96xf32, #tpu.memory_space<vmem>>, vector<64x96xf32>
    tpu.vector_store %arg9[%c0_6, %c0_7], %7 {strides = array<i32>} : memref<64x96xf32, #tpu.memory_space<vmem>>, vector<64x96xf32>,
    %c0_8 = arith.constant 0 : index
    %c0_9 = arith.constant 0 : index
    %c0_10 = arith.constant 0 : index
    %9 = vector.load %arg3[%c0_8, %c0_9, %c0_10] : memref<2x32x96xf32, #tpu.memory_space<vmem>>, vector<1x32x96xf32>
    %10 = vector.shape_cast %9 : vector<1x32x96xf32> to vector<32x96xf32>
    %11 = vector.extract_strided_slice %2 {offsets = [1, 0], sizes = [1, 96], strides = [1, 1]} : vector<2x96xf32> to vector<1x96xf32>
    %c0_11 = arith.constant 0 : index
    %c0_12 = arith.constant 0 : index
    %c0_13 = arith.constant 0 : index
    %12 = vector.load %arg2[%c0_11, %c0_12, %c0_13] : memref<2x8x32xf32, #tpu.memory_space<vmem>>, vector<1x8x32xf32>
    %13 = vector.shape_cast %12 : vector<1x8x32xf32> to vector<8x32xf32>
    %c0_14 = arith.constant 0 : index
    %c0_15 = arith.constant 0 : index
    %14 = vector.load %arg9[%c0_14, %c0_15] : memref<64x96xf32, #tpu.memory_space<vmem>>, vector<8x96xf32>
    %cst_16 = arith.constant dense<0.000000e+00> : vector<8x96xf32>
    %15 = tpu.matmul %13, %10, %cst_16 {dimension_numbers = #tpu.dot_dimension_numbers<[1], [0], [0], [1], [0, 0, 1, 1], [], []>} : vector<8x32xf32>, vector<32x96xf32>, vector<8x96xf32> -> vector<8x96xf32>
    %16 = vector.broadcast %11 : vector<1x96xf32> to vector<8x96xf32>
    %17 = arith.addf %15, %16 : vector<8x96xf32>
    %18 = vector.extract_strided_slice %14 {offsets = [0, 0], sizes = [8, 64], strides = [1, 1]} : vector<8x96xf32> to vector<8x64xf32>
    %19 = vector.extract_strided_slice %17 {offsets = [0, 0], sizes = [8, 64], strides = [1, 1]} : vector<8x96xf32> to vector<8x64xf32>
    %20 = arith.addf %18, %19 : vector<8x64xf32>
    %21 = arith.negf %20 : vector<8x64xf32>
    %22 = math.exp %21 : vector<8x64xf32>
    %cst_17 = arith.constant 1.000000e+00 : f32
    %23 = vector.broadcast %cst_17 : f32 to vector<8x64xf32>
    %24 = arith.addf %23, %22 : vector<8x64xf32>
    %25 = arith.divf %23, %24 : vector<8x64xf32>
    %26 = vector.extract_strided_slice %25 {offsets = [0, 0], sizes = [8, 32], strides = [1, 1]} : vector<8x64xf32> to vector<8x32xf32>
    %27 = vector.extract_strided_slice %25 {offsets = [0, 32], sizes = [8, 32], strides = [1, 1]} : vector<8x64xf32> to vector<8x32xf32>
    %28 = vector.extract_strided_slice %14 {offsets = [0, 64], sizes = [8, 32], strides = [1, 1]} : vector<8x96xf32> to vector<8x32xf32>
    %29 = vector.extract_strided_slice %17 {offsets = [0, 64], sizes = [8, 32], strides = [1, 1]} : vector<8x96xf32> to vector<8x32xf32>
    %30 = arith.mulf %26, %29 : vector<8x32xf32>
    %31 = arith.addf %28, %30 : vector<8x32xf32>
    %32 = math.tanh %31 : vector<8x32xf32>
    %cst_18 = arith.constant 1.000000e+00 : f32
    %33 = vector.broadcast %cst_18 : f32 to vector<8x32xf32>
    %34 = arith.subf %33, %27 : vector<8x32xf32>
    %35 = arith.mulf %34, %32 : vector<8x32xf32>
    %36 = arith.mulf %27, %13 : vector<8x32xf32>
    %37 = arith.addf %35, %36 : vector<8x32xf32>
    %c0_19 = arith.constant 0 : index
    %c0_20 = arith.constant 0 : index
    %38 = vector.load %arg10[%c0_19, %c0_20] : memref<64x32xf32, #tpu.memory_space<vmem>>, vector<8x32xf32>
    tpu.vector_store %arg10[%c0_19, %c0_20], %37 {strides = array<i32>} : memref<64x32xf32, #tpu.memory_space<vmem>>, vector<8x32xf32>,
    %c8 = arith.constant 8 : index
    %c0_21 = arith.constant 0 : index
    %39 = vector.load %arg9[%c8, %c0_21] : memref<64x96xf32, #tpu.memory_space<vmem>>, vector<8x96xf32>
    %cst_22 = arith.constant dense<0.000000e+00> : vector<8x96xf32>
    %40 = tpu.matmul %37, %10, %cst_22 {dimension_numbers = #tpu.dot_dimension_numbers<[1], [0], [0], [1], [0, 0, 1, 1], [], []>} : vector<8x32xf32>, vector<32x96xf32>, vector<8x96xf32> -> vector<8x96xf32>
    %41 = vector.broadcast %11 : vector<1x96xf32> to vector<8x96xf32>
    %42 = arith.addf %40, %41 : vector<8x96xf32>
    %43 = vector.extract_strided_slice %39 {offsets = [0, 0], sizes = [8, 64], strides = [1, 1]} : vector<8x96xf32> to vector<8x64xf32>
    %44 = vector.extract_strided_slice %42 {offsets = [0, 0], sizes = [8, 64], strides = [1, 1]} : vector<8x96xf32> to vector<8x64xf32>
    %45 = arith.addf %43, %44 : vector<8x64xf32>
    %46 = arith.negf %45 : vector<8x64xf32>
    %47 = math.exp %46 : vector<8x64xf32>
    %cst_23 = arith.constant 1.000000e+00 : f32
    %48 = vector.broadcast %cst_23 : f32 to vector<8x64xf32>
    %49 = arith.addf %48, %47 : vector<8x64xf32>
    %50 = arith.divf %48, %49 : vector<8x64xf32>
    %51 = vector.extract_strided_slice %50 {offsets = [0, 0], sizes = [8, 32], strides = [1, 1]} : vector<8x64xf32> to vector<8x32xf32>
    %52 = vector.extract_strided_slice %50 {offsets = [0, 32], sizes = [8, 32], strides = [1, 1]} : vector<8x64xf32> to vector<8x32xf32>
    %53 = vector.extract_strided_slice %39 {offsets = [0, 64], sizes = [8, 32], strides = [1, 1]} : vector<8x96xf32> to vector<8x32xf32>
    %54 = vector.extract_strided_slice %42 {offsets = [0, 64], sizes = [8, 32], strides = [1, 1]} : vector<8x96xf32> to vector<8x32xf32>
    %55 = arith.mulf %51, %54 : vector<8x32xf32>
    %56 = arith.addf %53, %55 : vector<8x32xf32>
    %57 = math.tanh %56 : vector<8x32xf32>
    %cst_24 = arith.constant 1.000000e+00 : f32
    %58 = vector.broadcast %cst_24 : f32 to vector<8x32xf32>
    %59 = arith.subf %58, %52 : vector<8x32xf32>
    %60 = arith.mulf %59, %57 : vector<8x32xf32>
    %61 = arith.mulf %52, %37 : vector<8x32xf32>
    %62 = arith.addf %60, %61 : vector<8x32xf32>
    %c8_25 = arith.constant 8 : index
    %c0_26 = arith.constant 0 : index
    %63 = vector.load %arg10[%c8_25, %c0_26] : memref<64x32xf32, #tpu.memory_space<vmem>>, vector<8x32xf32>
    tpu.vector_store %arg10[%c8_25, %c0_26], %62 {strides = array<i32>} : memref<64x32xf32, #tpu.memory_space<vmem>>, vector<8x32xf32>,
    %c16 = arith.constant 16 : index
    %c0_27 = arith.constant 0 : index
    %64 = vector.load %arg9[%c16, %c0_27] : memref<64x96xf32, #tpu.memory_space<vmem>>, vector<8x96xf32>
    %cst_28 = arith.constant dense<0.000000e+00> : vector<8x96xf32>
    %65 = tpu.matmul %62, %10, %cst_28 {dimension_numbers = #tpu.dot_dimension_numbers<[1], [0], [0], [1], [0, 0, 1, 1], [], []>} : vector<8x32xf32>, vector<32x96xf32>, vector<8x96xf32> -> vector<8x96xf32>
    %66 = vector.broadcast %11 : vector<1x96xf32> to vector<8x96xf32>
    %67 = arith.addf %65, %66 : vector<8x96xf32>
    %68 = vector.extract_strided_slice %64 {offsets = [0, 0], sizes = [8, 64], strides = [1, 1]} : vector<8x96xf32> to vector<8x64xf32>
    %69 = vector.extract_strided_slice %67 {offsets = [0, 0], sizes = [8, 64], strides = [1, 1]} : vector<8x96xf32> to vector<8x64xf32>
    %70 = arith.addf %68, %69 : vector<8x64xf32>
    %71 = arith.negf %70 : vector<8x64xf32>
    %72 = math.exp %71 : vector<8x64xf32>
    %cst_29 = arith.constant 1.000000e+00 : f32
    %73 = vector.broadcast %cst_29 : f32 to vector<8x64xf32>
    %74 = arith.addf %73, %72 : vector<8x64xf32>
    %75 = arith.divf %73, %74 : vector<8x64xf32>
    %76 = vector.extract_strided_slice %75 {offsets = [0, 0], sizes = [8, 32], strides = [1, 1]} : vector<8x64xf32> to vector<8x32xf32>
    %77 = vector.extract_strided_slice %75 {offsets = [0, 32], sizes = [8, 32], strides = [1, 1]} : vector<8x64xf32> to vector<8x32xf32>
    %78 = vector.extract_strided_slice %64 {offsets = [0, 64], sizes = [8, 32], strides = [1, 1]} : vector<8x96xf32> to vector<8x32xf32>
    %79 = vector.extract_strided_slice %67 {offsets = [0, 64], sizes = [8, 32], strides = [1, 1]} : vector<8x96xf32> to vector<8x32xf32>
    %80 = arith.mulf %76, %79 : vector<8x32xf32>
    %81 = arith.addf %78, %80 : vector<8x32xf32>
    %82 = math.tanh %81 : vector<8x32xf32>
    %cst_30 = arith.constant 1.000000e+00 : f32
    %83 = vector.broadcast %cst_30 : f32 to vector<8x32xf32>
    %84 = arith.subf %83, %77 : vector<8x32xf32>
    %85 = arith.mulf %84, %82 : vector<8x32xf32>
    %86 = arith.mulf %77, %62 : vector<8x32xf32>
    %87 = arith.addf %85, %86 : vector<8x32xf32>
    %c16_31 = arith.constant 16 : index
    %c0_32 = arith.constant 0 : index
    %88 = vector.load %arg10[%c16_31, %c0_32] : memref<64x32xf32, #tpu.memory_space<vmem>>, vector<8x32xf32>
    tpu.vector_store %arg10[%c16_31, %c0_32], %87 {strides = array<i32>} : memref<64x32xf32, #tpu.memory_space<vmem>>, vector<8x32xf32>,
    %c24 = arith.constant 24 : index
    %c0_33 = arith.constant 0 : index
    %89 = vector.load %arg9[%c24, %c0_33] : memref<64x96xf32, #tpu.memory_space<vmem>>, vector<8x96xf32>
    %cst_34 = arith.constant dense<0.000000e+00> : vector<8x96xf32>
    %90 = tpu.matmul %87, %10, %cst_34 {dimension_numbers = #tpu.dot_dimension_numbers<[1], [0], [0], [1], [0, 0, 1, 1], [], []>} : vector<8x32xf32>, vector<32x96xf32>, vector<8x96xf32> -> vector<8x96xf32>
    %91 = vector.broadcast %11 : vector<1x96xf32> to vector<8x96xf32>
    %92 = arith.addf %90, %91 : vector<8x96xf32>
    %93 = vector.extract_strided_slice %89 {offsets = [0, 0], sizes = [8, 64], strides = [1, 1]} : vector<8x96xf32> to vector<8x64xf32>
    %94 = vector.extract_strided_slice %92 {offsets = [0, 0], sizes = [8, 64], strides = [1, 1]} : vector<8x96xf32> to vector<8x64xf32>
    %95 = arith.addf %93, %94 : vector<8x64xf32>
    %96 = arith.negf %95 : vector<8x64xf32>
    %97 = math.exp %96 : vector<8x64xf32>
    %cst_35 = arith.constant 1.000000e+00 : f32
    %98 = vector.broadcast %cst_35 : f32 to vector<8x64xf32>
    %99 = arith.addf %98, %97 : vector<8x64xf32>
    %100 = arith.divf %98, %99 : vector<8x64xf32>
    %101 = vector.extract_strided_slice %100 {offsets = [0, 0], sizes = [8, 32], strides = [1, 1]} : vector<8x64xf32> to vector<8x32xf32>
    %102 = vector.extract_strided_slice %100 {offsets = [0, 32], sizes = [8, 32], strides = [1, 1]} : vector<8x64xf32> to vector<8x32xf32>
    %103 = vector.extract_strided_slice %89 {offsets = [0, 64], sizes = [8, 32], strides = [1, 1]} : vector<8x96xf32> to vector<8x32xf32>
    %104 = vector.extract_strided_slice %92 {offsets = [0, 64], sizes = [8, 32], strides = [1, 1]} : vector<8x96xf32> to vector<8x32xf32>
    %105 = arith.mulf %101, %104 : vector<8x32xf32>
    %106 = arith.addf %103, %105 : vector<8x32xf32>
    %107 = math.tanh %106 : vector<8x32xf32>
    %cst_36 = arith.constant 1.000000e+00 : f32
    %108 = vector.broadcast %cst_36 : f32 to vector<8x32xf32>
    %109 = arith.subf %108, %102 : vector<8x32xf32>
    %110 = arith.mulf %109, %107 : vector<8x32xf32>
    %111 = arith.mulf %102, %87 : vector<8x32xf32>
    %112 = arith.addf %110, %111 : vector<8x32xf32>
    %c24_37 = arith.constant 24 : index
    %c0_38 = arith.constant 0 : index
    %113 = vector.load %arg10[%c24_37, %c0_38] : memref<64x32xf32, #tpu.memory_space<vmem>>, vector<8x32xf32>
    tpu.vector_store %arg10[%c24_37, %c0_38], %112 {strides = array<i32>} : memref<64x32xf32, #tpu.memory_space<vmem>>, vector<8x32xf32>,
    %c32 = arith.constant 32 : index
    %c0_39 = arith.constant 0 : index
    %114 = vector.load %arg9[%c32, %c0_39] : memref<64x96xf32, #tpu.memory_space<vmem>>, vector<8x96xf32>
    %cst_40 = arith.constant dense<0.000000e+00> : vector<8x96xf32>
    %115 = tpu.matmul %112, %10, %cst_40 {dimension_numbers = #tpu.dot_dimension_numbers<[1], [0], [0], [1], [0, 0, 1, 1], [], []>} : vector<8x32xf32>, vector<32x96xf32>, vector<8x96xf32> -> vector<8x96xf32>
    %116 = vector.broadcast %11 : vector<1x96xf32> to vector<8x96xf32>
    %117 = arith.addf %115, %116 : vector<8x96xf32>
    %118 = vector.extract_strided_slice %114 {offsets = [0, 0], sizes = [8, 64], strides = [1, 1]} : vector<8x96xf32> to vector<8x64xf32>
    %119 = vector.extract_strided_slice %117 {offsets = [0, 0], sizes = [8, 64], strides = [1, 1]} : vector<8x96xf32> to vector<8x64xf32>
    %120 = arith.addf %118, %119 : vector<8x64xf32>
    %121 = arith.negf %120 : vector<8x64xf32>
    %122 = math.exp %121 : vector<8x64xf32>
    %cst_41 = arith.constant 1.000000e+00 : f32
    %123 = vector.broadcast %cst_41 : f32 to vector<8x64xf32>
    %124 = arith.addf %123, %122 : vector<8x64xf32>
    %125 = arith.divf %123, %124 : vector<8x64xf32>
    %126 = vector.extract_strided_slice %125 {offsets = [0, 0], sizes = [8, 32], strides = [1, 1]} : vector<8x64xf32> to vector<8x32xf32>
    %127 = vector.extract_strided_slice %125 {offsets = [0, 32], sizes = [8, 32], strides = [1, 1]} : vector<8x64xf32> to vector<8x32xf32>
    %128 = vector.extract_strided_slice %114 {offsets = [0, 64], sizes = [8, 32], strides = [1, 1]} : vector<8x96xf32> to vector<8x32xf32>
    %129 = vector.extract_strided_slice %117 {offsets = [0, 64], sizes = [8, 32], strides = [1, 1]} : vector<8x96xf32> to vector<8x32xf32>
    %130 = arith.mulf %126, %129 : vector<8x32xf32>
    %131 = arith.addf %128, %130 : vector<8x32xf32>
    %132 = math.tanh %131 : vector<8x32xf32>
    %cst_42 = arith.constant 1.000000e+00 : f32
    %133 = vector.broadcast %cst_42 : f32 to vector<8x32xf32>
    %134 = arith.subf %133, %127 : vector<8x32xf32>
    %135 = arith.mulf %134, %132 : vector<8x32xf32>
    %136 = arith.mulf %127, %112 : vector<8x32xf32>
    %137 = arith.addf %135, %136 : vector<8x32xf32>
    %c32_43 = arith.constant 32 : index
    %c0_44 = arith.constant 0 : index
    %138 = vector.load %arg10[%c32_43, %c0_44] : memref<64x32xf32, #tpu.memory_space<vmem>>, vector<8x32xf32>
    tpu.vector_store %arg10[%c32_43, %c0_44], %137 {strides = array<i32>} : memref<64x32xf32, #tpu.memory_space<vmem>>, vector<8x32xf32>,
    %c40 = arith.constant 40 : index
    %c0_45 = arith.constant 0 : index
    %139 = vector.load %arg9[%c40, %c0_45] : memref<64x96xf32, #tpu.memory_space<vmem>>, vector<8x96xf32>
    %cst_46 = arith.constant dense<0.000000e+00> : vector<8x96xf32>
    %140 = tpu.matmul %137, %10, %cst_46 {dimension_numbers = #tpu.dot_dimension_numbers<[1], [0], [0], [1], [0, 0, 1, 1], [], []>} : vector<8x32xf32>, vector<32x96xf32>, vector<8x96xf32> -> vector<8x96xf32>
    %141 = vector.broadcast %11 : vector<1x96xf32> to vector<8x96xf32>
    %142 = arith.addf %140, %141 : vector<8x96xf32>
    %143 = vector.extract_strided_slice %139 {offsets = [0, 0], sizes = [8, 64], strides = [1, 1]} : vector<8x96xf32> to vector<8x64xf32>
    %144 = vector.extract_strided_slice %142 {offsets = [0, 0], sizes = [8, 64], strides = [1, 1]} : vector<8x96xf32> to vector<8x64xf32>
    %145 = arith.addf %143, %144 : vector<8x64xf32>
    %146 = arith.negf %145 : vector<8x64xf32>
    %147 = math.exp %146 : vector<8x64xf32>
    %cst_47 = arith.constant 1.000000e+00 : f32
    %148 = vector.broadcast %cst_47 : f32 to vector<8x64xf32>
    %149 = arith.addf %148, %147 : vector<8x64xf32>
    %150 = arith.divf %148, %149 : vector<8x64xf32>
    %151 = vector.extract_strided_slice %150 {offsets = [0, 0], sizes = [8, 32], strides = [1, 1]} : vector<8x64xf32> to vector<8x32xf32>
    %152 = vector.extract_strided_slice %150 {offsets = [0, 32], sizes = [8, 32], strides = [1, 1]} : vector<8x64xf32> to vector<8x32xf32>
    %153 = vector.extract_strided_slice %139 {offsets = [0, 64], sizes = [8, 32], strides = [1, 1]} : vector<8x96xf32> to vector<8x32xf32>
    %154 = vector.extract_strided_slice %142 {offsets = [0, 64], sizes = [8, 32], strides = [1, 1]} : vector<8x96xf32> to vector<8x32xf32>
    %155 = arith.mulf %151, %154 : vector<8x32xf32>
    %156 = arith.addf %153, %155 : vector<8x32xf32>
    %157 = math.tanh %156 : vector<8x32xf32>
    %cst_48 = arith.constant 1.000000e+00 : f32
    %158 = vector.broadcast %cst_48 : f32 to vector<8x32xf32>
    %159 = arith.subf %158, %152 : vector<8x32xf32>
    %160 = arith.mulf %159, %157 : vector<8x32xf32>
    %161 = arith.mulf %152, %137 : vector<8x32xf32>
    %162 = arith.addf %160, %161 : vector<8x32xf32>
    %c40_49 = arith.constant 40 : index
    %c0_50 = arith.constant 0 : index
    %163 = vector.load %arg10[%c40_49, %c0_50] : memref<64x32xf32, #tpu.memory_space<vmem>>, vector<8x32xf32>
    tpu.vector_store %arg10[%c40_49, %c0_50], %162 {strides = array<i32>} : memref<64x32xf32, #tpu.memory_space<vmem>>, vector<8x32xf32>,
    %c48 = arith.constant 48 : index
    %c0_51 = arith.constant 0 : index
    %164 = vector.load %arg9[%c48, %c0_51] : memref<64x96xf32, #tpu.memory_space<vmem>>, vector<8x96xf32>
    %cst_52 = arith.constant dense<0.000000e+00> : vector<8x96xf32>
    %165 = tpu.matmul %162, %10, %cst_52 {dimension_numbers = #tpu.dot_dimension_numbers<[1], [0], [0], [1], [0, 0, 1, 1], [], []>} : vector<8x32xf32>, vector<32x96xf32>, vector<8x96xf32> -> vector<8x96xf32>
    %166 = vector.broadcast %11 : vector<1x96xf32> to vector<8x96xf32>
    %167 = arith.addf %165, %166 : vector<8x96xf32>
    %168 = vector.extract_strided_slice %164 {offsets = [0, 0], sizes = [8, 64], strides = [1, 1]} : vector<8x96xf32> to vector<8x64xf32>
    %169 = vector.extract_strided_slice %167 {offsets = [0, 0], sizes = [8, 64], strides = [1, 1]} : vector<8x96xf32> to vector<8x64xf32>
    %170 = arith.addf %168, %169 : vector<8x64xf32>
    %171 = arith.negf %170 : vector<8x64xf32>
    %172 = math.exp %171 : vector<8x64xf32>
    %cst_53 = arith.constant 1.000000e+00 : f32
    %173 = vector.broadcast %cst_53 : f32 to vector<8x64xf32>
    %174 = arith.addf %173, %172 : vector<8x64xf32>
    %175 = arith.divf %173, %174 : vector<8x64xf32>
    %176 = vector.extract_strided_slice %175 {offsets = [0, 0], sizes = [8, 32], strides = [1, 1]} : vector<8x64xf32> to vector<8x32xf32>
    %177 = vector.extract_strided_slice %175 {offsets = [0, 32], sizes = [8, 32], strides = [1, 1]} : vector<8x64xf32> to vector<8x32xf32>
    %178 = vector.extract_strided_slice %164 {offsets = [0, 64], sizes = [8, 32], strides = [1, 1]} : vector<8x96xf32> to vector<8x32xf32>
    %179 = vector.extract_strided_slice %167 {offsets = [0, 64], sizes = [8, 32], strides = [1, 1]} : vector<8x96xf32> to vector<8x32xf32>
    %180 = arith.mulf %176, %179 : vector<8x32xf32>
    %181 = arith.addf %178, %180 : vector<8x32xf32>
    %182 = math.tanh %181 : vector<8x32xf32>
    %cst_54 = arith.constant 1.000000e+00 : f32
    %183 = vector.broadcast %cst_54 : f32 to vector<8x32xf32>
    %184 = arith.subf %183, %177 : vector<8x32xf32>
    %185 = arith.mulf %184, %182 : vector<8x32xf32>
    %186 = arith.mulf %177, %162 : vector<8x32xf32>
    %187 = arith.addf %185, %186 : vector<8x32xf32>
    %c48_55 = arith.constant 48 : index
    %c0_56 = arith.constant 0 : index
    %188 = vector.load %arg10[%c48_55, %c0_56] : memref<64x32xf32, #tpu.memory_space<vmem>>, vector<8x32xf32>
    tpu.vector_store %arg10[%c48_55, %c0_56], %187 {strides = array<i32>} : memref<64x32xf32, #tpu.memory_space<vmem>>, vector<8x32xf32>,
    %c56 = arith.constant 56 : index
    %c0_57 = arith.constant 0 : index
    %189 = vector.load %arg9[%c56, %c0_57] : memref<64x96xf32, #tpu.memory_space<vmem>>, vector<8x96xf32>
    %cst_58 = arith.constant dense<0.000000e+00> : vector<8x96xf32>
    %190 = tpu.matmul %187, %10, %cst_58 {dimension_numbers = #tpu.dot_dimension_numbers<[1], [0], [0], [1], [0, 0, 1, 1], [], []>} : vector<8x32xf32>, vector<32x96xf32>, vector<8x96xf32> -> vector<8x96xf32>
    %191 = vector.broadcast %11 : vector<1x96xf32> to vector<8x96xf32>
    %192 = arith.addf %190, %191 : vector<8x96xf32>
    %193 = vector.extract_strided_slice %189 {offsets = [0, 0], sizes = [8, 64], strides = [1, 1]} : vector<8x96xf32> to vector<8x64xf32>
    %194 = vector.extract_strided_slice %192 {offsets = [0, 0], sizes = [8, 64], strides = [1, 1]} : vector<8x96xf32> to vector<8x64xf32>
    %195 = arith.addf %193, %194 : vector<8x64xf32>
    %196 = arith.negf %195 : vector<8x64xf32>
    %197 = math.exp %196 : vector<8x64xf32>
    %cst_59 = arith.constant 1.000000e+00 : f32
    %198 = vector.broadcast %cst_59 : f32 to vector<8x64xf32>
    %199 = arith.addf %198, %197 : vector<8x64xf32>
    %200 = arith.divf %198, %199 : vector<8x64xf32>
    %201 = vector.extract_strided_slice %200 {offsets = [0, 0], sizes = [8, 32], strides = [1, 1]} : vector<8x64xf32> to vector<8x32xf32>
    %202 = vector.extract_strided_slice %200 {offsets = [0, 32], sizes = [8, 32], strides = [1, 1]} : vector<8x64xf32> to vector<8x32xf32>
    %203 = vector.extract_strided_slice %189 {offsets = [0, 64], sizes = [8, 32], strides = [1, 1]} : vector<8x96xf32> to vector<8x32xf32>
    %204 = vector.extract_strided_slice %192 {offsets = [0, 64], sizes = [8, 32], strides = [1, 1]} : vector<8x96xf32> to vector<8x32xf32>
    %205 = arith.mulf %201, %204 : vector<8x32xf32>
    %206 = arith.addf %203, %205 : vector<8x32xf32>
    %207 = math.tanh %206 : vector<8x32xf32>
    %cst_60 = arith.constant 1.000000e+00 : f32
    %208 = vector.broadcast %cst_60 : f32 to vector<8x32xf32>
    %209 = arith.subf %208, %202 : vector<8x32xf32>
    %210 = arith.mulf %209, %207 : vector<8x32xf32>
    %211 = arith.mulf %202, %187 : vector<8x32xf32>
    %212 = arith.addf %210, %211 : vector<8x32xf32>
    %c56_61 = arith.constant 56 : index
    %c0_62 = arith.constant 0 : index
    %213 = vector.load %arg10[%c56_61, %c0_62] : memref<64x32xf32, #tpu.memory_space<vmem>>, vector<8x32xf32>
    tpu.vector_store %arg10[%c56_61, %c0_62], %212 {strides = array<i32>} : memref<64x32xf32, #tpu.memory_space<vmem>>, vector<8x32xf32>,
    %c0_63 = arith.constant 0 : index
    %c0_64 = arith.constant 0 : index
    %c0_65 = arith.constant 0 : index
    %214 = vector.load %arg8[%c0_63, %c0_64, %c0_65] : memref<2x8x32xf32, #tpu.memory_space<vmem>>, vector<1x8x32xf32>
    %215 = vector.shape_cast %214 : vector<1x8x32xf32> to vector<8x32xf32>
    %216 = vector.shape_cast %212 : vector<8x32xf32> to vector<1x8x32xf32>
    tpu.vector_store %arg8[%c0_63, %c0_64, %c0_65], %216 {strides = array<i32>} : memref<2x8x32xf32, #tpu.memory_space<vmem>>, vector<1x8x32xf32>,
    %c0_66 = arith.constant 0 : index
    %c0_67 = arith.constant 0 : index
    %217 = vector.load %arg10[%c0_66, %c0_67] : memref<64x32xf32, #tpu.memory_space<vmem>>, vector<64x32xf32>
    %c1 = arith.constant 1 : index
    %c0_68 = arith.constant 0 : index
    %c0_69 = arith.constant 0 : index
    %218 = vector.load %arg4[%c1, %c0_68, %c0_69] : memref<2x2x96xf32, #tpu.memory_space<vmem>>, vector<1x2x96xf32>
    %219 = vector.shape_cast %218 : vector<1x2x96xf32> to vector<2x96xf32>
    %c0_70 = arith.constant 0 : index
    %c0_71 = arith.constant 0 : index
    %220 = vector.load %arg6[%c0_70, %c0_71] : memref<32x96xf32, #tpu.memory_space<vmem>>, vector<32x96xf32>
    %cst_72 = arith.constant dense<0.000000e+00> : vector<64x96xf32>
    %221 = tpu.matmul %217, %220, %cst_72 {dimension_numbers = #tpu.dot_dimension_numbers<[1], [0], [0], [1], [0, 0, 1, 1], [], []>} : vector<64x32xf32>, vector<32x96xf32>, vector<64x96xf32> -> vector<64x96xf32>
    %222 = vector.extract_strided_slice %219 {offsets = [0, 0], sizes = [1, 96], strides = [1, 1]} : vector<2x96xf32> to vector<1x96xf32>
    %223 = vector.broadcast %222 : vector<1x96xf32> to vector<64x96xf32>
    %224 = arith.addf %221, %223 : vector<64x96xf32>
    %c0_73 = arith.constant 0 : index
    %c0_74 = arith.constant 0 : index
    %225 = vector.load %arg9[%c0_73, %c0_74] : memref<64x96xf32, #tpu.memory_space<vmem>>, vector<64x96xf32>
    tpu.vector_store %arg9[%c0_73, %c0_74], %224 {strides = array<i32>} : memref<64x96xf32, #tpu.memory_space<vmem>>, vector<64x96xf32>,
    %c1_75 = arith.constant 1 : index
    %c0_76 = arith.constant 0 : index
    %c0_77 = arith.constant 0 : index
    %226 = vector.load %arg3[%c1_75, %c0_76, %c0_77] : memref<2x32x96xf32, #tpu.memory_space<vmem>>, vector<1x32x96xf32>
    %227 = vector.shape_cast %226 : vector<1x32x96xf32> to vector<32x96xf32>
    %228 = vector.extract_strided_slice %219 {offsets = [1, 0], sizes = [1, 96], strides = [1, 1]} : vector<2x96xf32> to vector<1x96xf32>
    %c1_78 = arith.constant 1 : index
    %c0_79 = arith.constant 0 : index
    %c0_80 = arith.constant 0 : index
    %229 = vector.load %arg2[%c1_78, %c0_79, %c0_80] : memref<2x8x32xf32, #tpu.memory_space<vmem>>, vector<1x8x32xf32>
    %230 = vector.shape_cast %229 : vector<1x8x32xf32> to vector<8x32xf32>
    %c0_81 = arith.constant 0 : index
    %c0_82 = arith.constant 0 : index
    %231 = vector.load %arg9[%c0_81, %c0_82] : memref<64x96xf32, #tpu.memory_space<vmem>>, vector<8x96xf32>
    %cst_83 = arith.constant dense<0.000000e+00> : vector<8x96xf32>
    %232 = tpu.matmul %230, %227, %cst_83 {dimension_numbers = #tpu.dot_dimension_numbers<[1], [0], [0], [1], [0, 0, 1, 1], [], []>} : vector<8x32xf32>, vector<32x96xf32>, vector<8x96xf32> -> vector<8x96xf32>
    %233 = vector.broadcast %228 : vector<1x96xf32> to vector<8x96xf32>
    %234 = arith.addf %232, %233 : vector<8x96xf32>
    %235 = vector.extract_strided_slice %231 {offsets = [0, 0], sizes = [8, 64], strides = [1, 1]} : vector<8x96xf32> to vector<8x64xf32>
    %236 = vector.extract_strided_slice %234 {offsets = [0, 0], sizes = [8, 64], strides = [1, 1]} : vector<8x96xf32> to vector<8x64xf32>
    %237 = arith.addf %235, %236 : vector<8x64xf32>
    %238 = arith.negf %237 : vector<8x64xf32>
    %239 = math.exp %238 : vector<8x64xf32>
    %cst_84 = arith.constant 1.000000e+00 : f32
    %240 = vector.broadcast %cst_84 : f32 to vector<8x64xf32>
    %241 = arith.addf %240, %239 : vector<8x64xf32>
    %242 = arith.divf %240, %241 : vector<8x64xf32>
    %243 = vector.extract_strided_slice %242 {offsets = [0, 0], sizes = [8, 32], strides = [1, 1]} : vector<8x64xf32> to vector<8x32xf32>
    %244 = vector.extract_strided_slice %242 {offsets = [0, 32], sizes = [8, 32], strides = [1, 1]} : vector<8x64xf32> to vector<8x32xf32>
    %245 = vector.extract_strided_slice %231 {offsets = [0, 64], sizes = [8, 32], strides = [1, 1]} : vector<8x96xf32> to vector<8x32xf32>
    %246 = vector.extract_strided_slice %234 {offsets = [0, 64], sizes = [8, 32], strides = [1, 1]} : vector<8x96xf32> to vector<8x32xf32>
    %247 = arith.mulf %243, %246 : vector<8x32xf32>
    %248 = arith.addf %245, %247 : vector<8x32xf32>
    %249 = math.tanh %248 : vector<8x32xf32>
    %cst_85 = arith.constant 1.000000e+00 : f32
    %250 = vector.broadcast %cst_85 : f32 to vector<8x32xf32>
    %251 = arith.subf %250, %244 : vector<8x32xf32>
    %252 = arith.mulf %251, %249 : vector<8x32xf32>
    %253 = arith.mulf %244, %230 : vector<8x32xf32>
    %254 = arith.addf %252, %253 : vector<8x32xf32>
    %c0_86 = arith.constant 0 : index
    %c0_87 = arith.constant 0 : index
    %255 = vector.load %arg7[%c0_86, %c0_87] : memref<8x256xf32, #tpu.memory_space<vmem>>, vector<8x32xf32>
    tpu.vector_store %arg7[%c0_86, %c0_87], %254 {strides = array<i32>} : memref<8x256xf32, #tpu.memory_space<vmem>>, vector<8x32xf32>,
    %c8_88 = arith.constant 8 : index
    %c0_89 = arith.constant 0 : index
    %256 = vector.load %arg9[%c8_88, %c0_89] : memref<64x96xf32, #tpu.memory_space<vmem>>, vector<8x96xf32>
    %cst_90 = arith.constant dense<0.000000e+00> : vector<8x96xf32>
    %257 = tpu.matmul %254, %227, %cst_90 {dimension_numbers = #tpu.dot_dimension_numbers<[1], [0], [0], [1], [0, 0, 1, 1], [], []>} : vector<8x32xf32>, vector<32x96xf32>, vector<8x96xf32> -> vector<8x96xf32>
    %258 = vector.broadcast %228 : vector<1x96xf32> to vector<8x96xf32>
    %259 = arith.addf %257, %258 : vector<8x96xf32>
    %260 = vector.extract_strided_slice %256 {offsets = [0, 0], sizes = [8, 64], strides = [1, 1]} : vector<8x96xf32> to vector<8x64xf32>
    %261 = vector.extract_strided_slice %259 {offsets = [0, 0], sizes = [8, 64], strides = [1, 1]} : vector<8x96xf32> to vector<8x64xf32>
    %262 = arith.addf %260, %261 : vector<8x64xf32>
    %263 = arith.negf %262 : vector<8x64xf32>
    %264 = math.exp %263 : vector<8x64xf32>
    %cst_91 = arith.constant 1.000000e+00 : f32
    %265 = vector.broadcast %cst_91 : f32 to vector<8x64xf32>
    %266 = arith.addf %265, %264 : vector<8x64xf32>
    %267 = arith.divf %265, %266 : vector<8x64xf32>
    %268 = vector.extract_strided_slice %267 {offsets = [0, 0], sizes = [8, 32], strides = [1, 1]} : vector<8x64xf32> to vector<8x32xf32>
    %269 = vector.extract_strided_slice %267 {offsets = [0, 32], sizes = [8, 32], strides = [1, 1]} : vector<8x64xf32> to vector<8x32xf32>
    %270 = vector.extract_strided_slice %256 {offsets = [0, 64], sizes = [8, 32], strides = [1, 1]} : vector<8x96xf32> to vector<8x32xf32>
    %271 = vector.extract_strided_slice %259 {offsets = [0, 64], sizes = [8, 32], strides = [1, 1]} : vector<8x96xf32> to vector<8x32xf32>
    %272 = arith.mulf %268, %271 : vector<8x32xf32>
    %273 = arith.addf %270, %272 : vector<8x32xf32>
    %274 = math.tanh %273 : vector<8x32xf32>
    %cst_92 = arith.constant 1.000000e+00 : f32
    %275 = vector.broadcast %cst_92 : f32 to vector<8x32xf32>
    %276 = arith.subf %275, %269 : vector<8x32xf32>
    %277 = arith.mulf %276, %274 : vector<8x32xf32>
    %278 = arith.mulf %269, %254 : vector<8x32xf32>
    %279 = arith.addf %277, %278 : vector<8x32xf32>
    %c0_93 = arith.constant 0 : index
    %c32_94 = arith.constant 32 : index
    %280 = vector.load %arg7[%c0_93, %c32_94] : memref<8x256xf32, #tpu.memory_space<vmem>>, vector<8x32xf32>
    tpu.vector_store %arg7[%c0_93, %c32_94], %279 {strides = array<i32>} : memref<8x256xf32, #tpu.memory_space<vmem>>, vector<8x32xf32>,
    %c16_95 = arith.constant 16 : index
    %c0_96 = arith.constant 0 : index
    %281 = vector.load %arg9[%c16_95, %c0_96] : memref<64x96xf32, #tpu.memory_space<vmem>>, vector<8x96xf32>
    %cst_97 = arith.constant dense<0.000000e+00> : vector<8x96xf32>
    %282 = tpu.matmul %279, %227, %cst_97 {dimension_numbers = #tpu.dot_dimension_numbers<[1], [0], [0], [1], [0, 0, 1, 1], [], []>} : vector<8x32xf32>, vector<32x96xf32>, vector<8x96xf32> -> vector<8x96xf32>
    %283 = vector.broadcast %228 : vector<1x96xf32> to vector<8x96xf32>
    %284 = arith.addf %282, %283 : vector<8x96xf32>
    %285 = vector.extract_strided_slice %281 {offsets = [0, 0], sizes = [8, 64], strides = [1, 1]} : vector<8x96xf32> to vector<8x64xf32>
    %286 = vector.extract_strided_slice %284 {offsets = [0, 0], sizes = [8, 64], strides = [1, 1]} : vector<8x96xf32> to vector<8x64xf32>
    %287 = arith.addf %285, %286 : vector<8x64xf32>
    %288 = arith.negf %287 : vector<8x64xf32>
    %289 = math.exp %288 : vector<8x64xf32>
    %cst_98 = arith.constant 1.000000e+00 : f32
    %290 = vector.broadcast %cst_98 : f32 to vector<8x64xf32>
    %291 = arith.addf %290, %289 : vector<8x64xf32>
    %292 = arith.divf %290, %291 : vector<8x64xf32>
    %293 = vector.extract_strided_slice %292 {offsets = [0, 0], sizes = [8, 32], strides = [1, 1]} : vector<8x64xf32> to vector<8x32xf32>
    %294 = vector.extract_strided_slice %292 {offsets = [0, 32], sizes = [8, 32], strides = [1, 1]} : vector<8x64xf32> to vector<8x32xf32>
    %295 = vector.extract_strided_slice %281 {offsets = [0, 64], sizes = [8, 32], strides = [1, 1]} : vector<8x96xf32> to vector<8x32xf32>
    %296 = vector.extract_strided_slice %284 {offsets = [0, 64], sizes = [8, 32], strides = [1, 1]} : vector<8x96xf32> to vector<8x32xf32>
    %297 = arith.mulf %293, %296 : vector<8x32xf32>
    %298 = arith.addf %295, %297 : vector<8x32xf32>
    %299 = math.tanh %298 : vector<8x32xf32>
    %cst_99 = arith.constant 1.000000e+00 : f32
    %300 = vector.broadcast %cst_99 : f32 to vector<8x32xf32>
    %301 = arith.subf %300, %294 : vector<8x32xf32>
    %302 = arith.mulf %301, %299 : vector<8x32xf32>
    %303 = arith.mulf %294, %279 : vector<8x32xf32>
    %304 = arith.addf %302, %303 : vector<8x32xf32>
    %c0_100 = arith.constant 0 : index
    %c64 = arith.constant 64 : index
    %305 = vector.load %arg7[%c0_100, %c64] : memref<8x256xf32, #tpu.memory_space<vmem>>, vector<8x32xf32>
    tpu.vector_store %arg7[%c0_100, %c64], %304 {strides = array<i32>} : memref<8x256xf32, #tpu.memory_space<vmem>>, vector<8x32xf32>,
    %c24_101 = arith.constant 24 : index
    %c0_102 = arith.constant 0 : index
    %306 = vector.load %arg9[%c24_101, %c0_102] : memref<64x96xf32, #tpu.memory_space<vmem>>, vector<8x96xf32>
    %cst_103 = arith.constant dense<0.000000e+00> : vector<8x96xf32>
    %307 = tpu.matmul %304, %227, %cst_103 {dimension_numbers = #tpu.dot_dimension_numbers<[1], [0], [0], [1], [0, 0, 1, 1], [], []>} : vector<8x32xf32>, vector<32x96xf32>, vector<8x96xf32> -> vector<8x96xf32>
    %308 = vector.broadcast %228 : vector<1x96xf32> to vector<8x96xf32>
    %309 = arith.addf %307, %308 : vector<8x96xf32>
    %310 = vector.extract_strided_slice %306 {offsets = [0, 0], sizes = [8, 64], strides = [1, 1]} : vector<8x96xf32> to vector<8x64xf32>
    %311 = vector.extract_strided_slice %309 {offsets = [0, 0], sizes = [8, 64], strides = [1, 1]} : vector<8x96xf32> to vector<8x64xf32>
    %312 = arith.addf %310, %311 : vector<8x64xf32>
    %313 = arith.negf %312 : vector<8x64xf32>
    %314 = math.exp %313 : vector<8x64xf32>
    %cst_104 = arith.constant 1.000000e+00 : f32
    %315 = vector.broadcast %cst_104 : f32 to vector<8x64xf32>
    %316 = arith.addf %315, %314 : vector<8x64xf32>
    %317 = arith.divf %315, %316 : vector<8x64xf32>
    %318 = vector.extract_strided_slice %317 {offsets = [0, 0], sizes = [8, 32], strides = [1, 1]} : vector<8x64xf32> to vector<8x32xf32>
    %319 = vector.extract_strided_slice %317 {offsets = [0, 32], sizes = [8, 32], strides = [1, 1]} : vector<8x64xf32> to vector<8x32xf32>
    %320 = vector.extract_strided_slice %306 {offsets = [0, 64], sizes = [8, 32], strides = [1, 1]} : vector<8x96xf32> to vector<8x32xf32>
    %321 = vector.extract_strided_slice %309 {offsets = [0, 64], sizes = [8, 32], strides = [1, 1]} : vector<8x96xf32> to vector<8x32xf32>
    %322 = arith.mulf %318, %321 : vector<8x32xf32>
    %323 = arith.addf %320, %322 : vector<8x32xf32>
    %324 = math.tanh %323 : vector<8x32xf32>
    %cst_105 = arith.constant 1.000000e+00 : f32
    %325 = vector.broadcast %cst_105 : f32 to vector<8x32xf32>
    %326 = arith.subf %325, %319 : vector<8x32xf32>
    %327 = arith.mulf %326, %324 : vector<8x32xf32>
    %328 = arith.mulf %319, %304 : vector<8x32xf32>
    %329 = arith.addf %327, %328 : vector<8x32xf32>
    %c0_106 = arith.constant 0 : index
    %c96 = arith.constant 96 : index
    %330 = vector.load %arg7[%c0_106, %c96] : memref<8x256xf32, #tpu.memory_space<vmem>>, vector<8x32xf32>
    tpu.vector_store %arg7[%c0_106, %c96], %329 {strides = array<i32>} : memref<8x256xf32, #tpu.memory_space<vmem>>, vector<8x32xf32>,
    %c32_107 = arith.constant 32 : index
    %c0_108 = arith.constant 0 : index
    %331 = vector.load %arg9[%c32_107, %c0_108] : memref<64x96xf32, #tpu.memory_space<vmem>>, vector<8x96xf32>
    %cst_109 = arith.constant dense<0.000000e+00> : vector<8x96xf32>
    %332 = tpu.matmul %329, %227, %cst_109 {dimension_numbers = #tpu.dot_dimension_numbers<[1], [0], [0], [1], [0, 0, 1, 1], [], []>} : vector<8x32xf32>, vector<32x96xf32>, vector<8x96xf32> -> vector<8x96xf32>
    %333 = vector.broadcast %228 : vector<1x96xf32> to vector<8x96xf32>
    %334 = arith.addf %332, %333 : vector<8x96xf32>
    %335 = vector.extract_strided_slice %331 {offsets = [0, 0], sizes = [8, 64], strides = [1, 1]} : vector<8x96xf32> to vector<8x64xf32>
    %336 = vector.extract_strided_slice %334 {offsets = [0, 0], sizes = [8, 64], strides = [1, 1]} : vector<8x96xf32> to vector<8x64xf32>
    %337 = arith.addf %335, %336 : vector<8x64xf32>
    %338 = arith.negf %337 : vector<8x64xf32>
    %339 = math.exp %338 : vector<8x64xf32>
    %cst_110 = arith.constant 1.000000e+00 : f32
    %340 = vector.broadcast %cst_110 : f32 to vector<8x64xf32>
    %341 = arith.addf %340, %339 : vector<8x64xf32>
    %342 = arith.divf %340, %341 : vector<8x64xf32>
    %343 = vector.extract_strided_slice %342 {offsets = [0, 0], sizes = [8, 32], strides = [1, 1]} : vector<8x64xf32> to vector<8x32xf32>
    %344 = vector.extract_strided_slice %342 {offsets = [0, 32], sizes = [8, 32], strides = [1, 1]} : vector<8x64xf32> to vector<8x32xf32>
    %345 = vector.extract_strided_slice %331 {offsets = [0, 64], sizes = [8, 32], strides = [1, 1]} : vector<8x96xf32> to vector<8x32xf32>
    %346 = vector.extract_strided_slice %334 {offsets = [0, 64], sizes = [8, 32], strides = [1, 1]} : vector<8x96xf32> to vector<8x32xf32>
    %347 = arith.mulf %343, %346 : vector<8x32xf32>
    %348 = arith.addf %345, %347 : vector<8x32xf32>
    %349 = math.tanh %348 : vector<8x32xf32>
    %cst_111 = arith.constant 1.000000e+00 : f32
    %350 = vector.broadcast %cst_111 : f32 to vector<8x32xf32>
    %351 = arith.subf %350, %344 : vector<8x32xf32>
    %352 = arith.mulf %351, %349 : vector<8x32xf32>
    %353 = arith.mulf %344, %329 : vector<8x32xf32>
    %354 = arith.addf %352, %353 : vector<8x32xf32>
    %c0_112 = arith.constant 0 : index
    %c128 = arith.constant 128 : index
    %355 = vector.load %arg7[%c0_112, %c128] : memref<8x256xf32, #tpu.memory_space<vmem>>, vector<8x32xf32>
    tpu.vector_store %arg7[%c0_112, %c128], %354 {strides = array<i32>} : memref<8x256xf32, #tpu.memory_space<vmem>>, vector<8x32xf32>,
    %c40_113 = arith.constant 40 : index
    %c0_114 = arith.constant 0 : index
    %356 = vector.load %arg9[%c40_113, %c0_114] : memref<64x96xf32, #tpu.memory_space<vmem>>, vector<8x96xf32>
    %cst_115 = arith.constant dense<0.000000e+00> : vector<8x96xf32>
    %357 = tpu.matmul %354, %227, %cst_115 {dimension_numbers = #tpu.dot_dimension_numbers<[1], [0], [0], [1], [0, 0, 1, 1], [], []>} : vector<8x32xf32>, vector<32x96xf32>, vector<8x96xf32> -> vector<8x96xf32>
    %358 = vector.broadcast %228 : vector<1x96xf32> to vector<8x96xf32>
    %359 = arith.addf %357, %358 : vector<8x96xf32>
    %360 = vector.extract_strided_slice %356 {offsets = [0, 0], sizes = [8, 64], strides = [1, 1]} : vector<8x96xf32> to vector<8x64xf32>
    %361 = vector.extract_strided_slice %359 {offsets = [0, 0], sizes = [8, 64], strides = [1, 1]} : vector<8x96xf32> to vector<8x64xf32>
    %362 = arith.addf %360, %361 : vector<8x64xf32>
    %363 = arith.negf %362 : vector<8x64xf32>
    %364 = math.exp %363 : vector<8x64xf32>
    %cst_116 = arith.constant 1.000000e+00 : f32
    %365 = vector.broadcast %cst_116 : f32 to vector<8x64xf32>
    %366 = arith.addf %365, %364 : vector<8x64xf32>
    %367 = arith.divf %365, %366 : vector<8x64xf32>
    %368 = vector.extract_strided_slice %367 {offsets = [0, 0], sizes = [8, 32], strides = [1, 1]} : vector<8x64xf32> to vector<8x32xf32>
    %369 = vector.extract_strided_slice %367 {offsets = [0, 32], sizes = [8, 32], strides = [1, 1]} : vector<8x64xf32> to vector<8x32xf32>
    %370 = vector.extract_strided_slice %356 {offsets = [0, 64], sizes = [8, 32], strides = [1, 1]} : vector<8x96xf32> to vector<8x32xf32>
    %371 = vector.extract_strided_slice %359 {offsets = [0, 64], sizes = [8, 32], strides = [1, 1]} : vector<8x96xf32> to vector<8x32xf32>
    %372 = arith.mulf %368, %371 : vector<8x32xf32>
    %373 = arith.addf %370, %372 : vector<8x32xf32>
    %374 = math.tanh %373 : vector<8x32xf32>
    %cst_117 = arith.constant 1.000000e+00 : f32
    %375 = vector.broadcast %cst_117 : f32 to vector<8x32xf32>
    %376 = arith.subf %375, %369 : vector<8x32xf32>
    %377 = arith.mulf %376, %374 : vector<8x32xf32>
    %378 = arith.mulf %369, %354 : vector<8x32xf32>
    %379 = arith.addf %377, %378 : vector<8x32xf32>
    %c0_118 = arith.constant 0 : index
    %c160 = arith.constant 160 : index
    %380 = vector.load %arg7[%c0_118, %c160] : memref<8x256xf32, #tpu.memory_space<vmem>>, vector<8x32xf32>
    tpu.vector_store %arg7[%c0_118, %c160], %379 {strides = array<i32>} : memref<8x256xf32, #tpu.memory_space<vmem>>, vector<8x32xf32>,
    %c48_119 = arith.constant 48 : index
    %c0_120 = arith.constant 0 : index
    %381 = vector.load %arg9[%c48_119, %c0_120] : memref<64x96xf32, #tpu.memory_space<vmem>>, vector<8x96xf32>
    %cst_121 = arith.constant dense<0.000000e+00> : vector<8x96xf32>
    %382 = tpu.matmul %379, %227, %cst_121 {dimension_numbers = #tpu.dot_dimension_numbers<[1], [0], [0], [1], [0, 0, 1, 1], [], []>} : vector<8x32xf32>, vector<32x96xf32>, vector<8x96xf32> -> vector<8x96xf32>
    %383 = vector.broadcast %228 : vector<1x96xf32> to vector<8x96xf32>
    %384 = arith.addf %382, %383 : vector<8x96xf32>
    %385 = vector.extract_strided_slice %381 {offsets = [0, 0], sizes = [8, 64], strides = [1, 1]} : vector<8x96xf32> to vector<8x64xf32>
    %386 = vector.extract_strided_slice %384 {offsets = [0, 0], sizes = [8, 64], strides = [1, 1]} : vector<8x96xf32> to vector<8x64xf32>
    %387 = arith.addf %385, %386 : vector<8x64xf32>
    %388 = arith.negf %387 : vector<8x64xf32>
    %389 = math.exp %388 : vector<8x64xf32>
    %cst_122 = arith.constant 1.000000e+00 : f32
    %390 = vector.broadcast %cst_122 : f32 to vector<8x64xf32>
    %391 = arith.addf %390, %389 : vector<8x64xf32>
    %392 = arith.divf %390, %391 : vector<8x64xf32>
    %393 = vector.extract_strided_slice %392 {offsets = [0, 0], sizes = [8, 32], strides = [1, 1]} : vector<8x64xf32> to vector<8x32xf32>
    %394 = vector.extract_strided_slice %392 {offsets = [0, 32], sizes = [8, 32], strides = [1, 1]} : vector<8x64xf32> to vector<8x32xf32>
    %395 = vector.extract_strided_slice %381 {offsets = [0, 64], sizes = [8, 32], strides = [1, 1]} : vector<8x96xf32> to vector<8x32xf32>
    %396 = vector.extract_strided_slice %384 {offsets = [0, 64], sizes = [8, 32], strides = [1, 1]} : vector<8x96xf32> to vector<8x32xf32>
    %397 = arith.mulf %393, %396 : vector<8x32xf32>
    %398 = arith.addf %395, %397 : vector<8x32xf32>
    %399 = math.tanh %398 : vector<8x32xf32>
    %cst_123 = arith.constant 1.000000e+00 : f32
    %400 = vector.broadcast %cst_123 : f32 to vector<8x32xf32>
    %401 = arith.subf %400, %394 : vector<8x32xf32>
    %402 = arith.mulf %401, %399 : vector<8x32xf32>
    %403 = arith.mulf %394, %379 : vector<8x32xf32>
    %404 = arith.addf %402, %403 : vector<8x32xf32>
    %c0_124 = arith.constant 0 : index
    %c192 = arith.constant 192 : index
    %405 = vector.load %arg7[%c0_124, %c192] : memref<8x256xf32, #tpu.memory_space<vmem>>, vector<8x32xf32>
    tpu.vector_store %arg7[%c0_124, %c192], %404 {strides = array<i32>} : memref<8x256xf32, #tpu.memory_space<vmem>>, vector<8x32xf32>,
    %c56_125 = arith.constant 56 : index
    %c0_126 = arith.constant 0 : index
    %406 = vector.load %arg9[%c56_125, %c0_126] : memref<64x96xf32, #tpu.memory_space<vmem>>, vector<8x96xf32>
    %cst_127 = arith.constant dense<0.000000e+00> : vector<8x96xf32>
    %407 = tpu.matmul %404, %227, %cst_127 {dimension_numbers = #tpu.dot_dimension_numbers<[1], [0], [0], [1], [0, 0, 1, 1], [], []>} : vector<8x32xf32>, vector<32x96xf32>, vector<8x96xf32> -> vector<8x96xf32>
    %408 = vector.broadcast %228 : vector<1x96xf32> to vector<8x96xf32>
    %409 = arith.addf %407, %408 : vector<8x96xf32>
    %410 = vector.extract_strided_slice %406 {offsets = [0, 0], sizes = [8, 64], strides = [1, 1]} : vector<8x96xf32> to vector<8x64xf32>
    %411 = vector.extract_strided_slice %409 {offsets = [0, 0], sizes = [8, 64], strides = [1, 1]} : vector<8x96xf32> to vector<8x64xf32>
    %412 = arith.addf %410, %411 : vector<8x64xf32>
    %413 = arith.negf %412 : vector<8x64xf32>
    %414 = math.exp %413 : vector<8x64xf32>
    %cst_128 = arith.constant 1.000000e+00 : f32
    %415 = vector.broadcast %cst_128 : f32 to vector<8x64xf32>
    %416 = arith.addf %415, %414 : vector<8x64xf32>
    %417 = arith.divf %415, %416 : vector<8x64xf32>
    %418 = vector.extract_strided_slice %417 {offsets = [0, 0], sizes = [8, 32], strides = [1, 1]} : vector<8x64xf32> to vector<8x32xf32>
    %419 = vector.extract_strided_slice %417 {offsets = [0, 32], sizes = [8, 32], strides = [1, 1]} : vector<8x64xf32> to vector<8x32xf32>
    %420 = vector.extract_strided_slice %406 {offsets = [0, 64], sizes = [8, 32], strides = [1, 1]} : vector<8x96xf32> to vector<8x32xf32>
    %421 = vector.extract_strided_slice %409 {offsets = [0, 64], sizes = [8, 32], strides = [1, 1]} : vector<8x96xf32> to vector<8x32xf32>
    %422 = arith.mulf %418, %421 : vector<8x32xf32>
    %423 = arith.addf %420, %422 : vector<8x32xf32>
    %424 = math.tanh %423 : vector<8x32xf32>
    %cst_129 = arith.constant 1.000000e+00 : f32
    %425 = vector.broadcast %cst_129 : f32 to vector<8x32xf32>
    %426 = arith.subf %425, %419 : vector<8x32xf32>
    %427 = arith.mulf %426, %424 : vector<8x32xf32>
    %428 = arith.mulf %419, %404 : vector<8x32xf32>
    %429 = arith.addf %427, %428 : vector<8x32xf32>
    %c0_130 = arith.constant 0 : index
    %c224 = arith.constant 224 : index
    %430 = vector.load %arg7[%c0_130, %c224] : memref<8x256xf32, #tpu.memory_space<vmem>>, vector<8x32xf32>
    tpu.vector_store %arg7[%c0_130, %c224], %429 {strides = array<i32>} : memref<8x256xf32, #tpu.memory_space<vmem>>, vector<8x32xf32>,
    %c1_131 = arith.constant 1 : index
    %c0_132 = arith.constant 0 : index
    %c0_133 = arith.constant 0 : index
    %431 = vector.load %arg8[%c1_131, %c0_132, %c0_133] : memref<2x8x32xf32, #tpu.memory_space<vmem>>, vector<1x8x32xf32>
    %432 = vector.shape_cast %431 : vector<1x8x32xf32> to vector<8x32xf32>
    %433 = vector.shape_cast %429 : vector<8x32xf32> to vector<1x8x32xf32>
    tpu.vector_store %arg8[%c1_131, %c0_132, %c0_133], %433 {strides = array<i32>} : memref<2x8x32xf32, #tpu.memory_space<vmem>>, vector<1x8x32xf32>,
    return
  }
  func.func @transform_0(%arg0: i32) -> (i32, i32) {
    %c0_i32 = arith.constant 0 : i32
    %c0_i32_0 = arith.constant 0 : i32
    %c0_i32_1 = arith.constant 0 : i32
    return %c0_i32, %c0_i32_0 : i32, i32
  }
  func.func @transform_1(%arg0: i32) -> (i32, i32, i32) {
    %c0_i32 = arith.constant 0 : i32
    %c0_i32_0 = arith.constant 0 : i32
    %c0_i32_1 = arith.constant 0 : i32
    %c0_i32_2 = arith.constant 0 : i32
    return %c0_i32, %c0_i32_0, %c0_i32_1 : i32, i32, i32
  }
  func.func @transform_2(%arg0: i32) -> (i32, i32, i32) {
    %c0_i32 = arith.constant 0 : i32
    %c0_i32_0 = arith.constant 0 : i32
    %c0_i32_1 = arith.constant 0 : i32
    %c0_i32_2 = arith.constant 0 : i32
    return %c0_i32, %c0_i32_0, %c0_i32_1 : i32, i32, i32
  }
  func.func @transform_3(%arg0: i32) -> (i32, i32, i32) {
    %c0_i32 = arith.constant 0 : i32
    %c0_i32_0 = arith.constant 0 : i32
    %c0_i32_1 = arith.constant 0 : i32
    %c0_i32_2 = arith.constant 0 : i32
    return %c0_i32, %c0_i32_0, %c0_i32_1 : i32, i32, i32
  }
  func.func @transform_4(%arg0: i32) -> (i32, i32) {
    %c0_i32 = arith.constant 0 : i32
    %c0_i32_0 = arith.constant 0 : i32
    %c0_i32_1 = arith.constant 0 : i32
    return %c0_i32, %c0_i32_0 : i32, i32
  }
  func.func @transform_5(%arg0: i32) -> (i32, i32) {
    %c0_i32 = arith.constant 0 : i32
    %c0_i32_0 = arith.constant 0 : i32
    %c0_i32_1 = arith.constant 0 : i32
    return %c0_i32, %c0_i32_0 : i32, i32
  }
  func.func @transform_6(%arg0: i32) -> (i32, i32) {
    %c0_i32 = arith.constant 0 : i32
    %c0_i32_0 = arith.constant 0 : i32
    %c0_i32_1 = arith.constant 0 : i32
    return %c0_i32, %c0_i32_0 : i32, i32
  }
  func.func @transform_7(%arg0: i32) -> (i32, i32, i32) {
    %c0_i32 = arith.constant 0 : i32
    %c0_i32_0 = arith.constant 0 : i32
    %c0_i32_1 = arith.constant 0 : i32
    %c0_i32_2 = arith.constant 0 : i32
    return %c0_i32, %c0_i32_0, %c0_i32_1 : i32, i32, i32
  }
}

</mosaic_0001>

<llo_original>
// kernel: _gru_forward.1
$region0: #{_gru_forward.1}
  #allocation0 [shape = 'u32[]', space=smem, size = 0x4, offset = 0x4, fixed_abs, tag = 'smem constant byte address 0x4 - core index']
  #allocation1 [shape = 'u32[144,128]{1,0:T(1,128)}', space=vmem, size = 0x12000, scoped, tag = 'internal scratch']
  #allocation2 [shape = 'f32[64,96]{1,0:T(8,128)}', space=vmem, size = 0x8000, scoped, tag = 'scratch operand']
  #allocation3 [shape = 'f32[64,32]{1,0:T(8,128)}', space=vmem, size = 0x8000, scoped, tag = 'scratch operand']
  %s0 = inlined_call_operand.vmem [shape: f32[64,16], index: 0, kind: input, shape index: {}]
  %s1 = inlined_call_operand.vmem [shape: f32[2,8,32], index: 1, kind: input, shape index: {}]
  %s2 = inlined_call_operand.vmem [shape: f32[2,32,96], index: 2, kind: input, shape index: {}]
  %s3 = inlined_call_operand.vmem [shape: f32[2,2,96], index: 3, kind: input, shape index: {}]
  %s4 = inlined_call_operand.vmem [shape: f32[16,96], index: 4, kind: input, shape index: {}]
  %s5 = inlined_call_operand.vmem [shape: f32[32,96], index: 5, kind: input, shape index: {}]
  %s6 = inlined_call_operand.vmem [shape: f32[8,256], index: 6, kind: output, shape index: {0}]
  %s7 = inlined_call_operand.vmem [shape: f32[2,8,32], index: 7, kind: output, shape index: {1}]
  %8 = xla_tuple %s6, %s7
  %s9 = sld [smem:[#allocation0]]
  $region42: #{_gru_forward.1} parent=0
    _
  %s11 = ssub.s32 1, %s9
  %s12 = scalar_select 0, %s11, %s9
  // Predicated region
  $region2: #{_gru_forward.1} parent=0 // pred_check
    _
  $region3: #{_gru_forward.1} parent=0 // pred_check_branch
    %14 = sbr.rel (0) target = $region5
  $region4: #{_gru_forward.1} parent=0 // pred_region
    _
  $region5: #{_gru_forward.1} parent=0 // pred_fallthru
    _
  // Predicated region
  $region6: #{_gru_forward.1} parent=0 // pred_check
    _
  $region7: #{_gru_forward.1} parent=0 // pred_check_branch
    %16 = sbr.rel (0) target = $region9
  $region8: #{_gru_forward.1} parent=0 // pred_region
    _
  $region9: #{_gru_forward.1} parent=0 // pred_fallthru
    _
  // Predicated region
  $region10: #{_gru_forward.1} parent=0 // pred_check
    _
  $region11: #{_gru_forward.1} parent=0 // pred_check_branch
    %18 = sbr.rel (0) target = $region13
  $region12: #{_gru_forward.1} parent=0 // pred_region
    _
  $region13: #{_gru_forward.1} parent=0 // pred_fallthru
    _
  // Predicated region
  $region14: #{_gru_forward.1} parent=0 // pred_check
    _
  $region15: #{_gru_forward.1} parent=0 // pred_check_branch
    %20 = sbr.rel (0) target = $region17
  $region16: #{_gru_forward.1} parent=0 // pred_region
    _
  $region17: #{_gru_forward.1} parent=0 // pred_fallthru
    _
  // Predicated region
  $region18: #{_gru_forward.1} parent=0 // pred_check
    _
  $region19: #{_gru_forward.1} parent=0 // pred_check_branch
    %22 = sbr.rel (0) target = $region21
  $region20: #{_gru_forward.1} parent=0 // pred_region
    _
  $region21: #{_gru_forward.1} parent=0 // pred_fallthru
    _
  // Predicated region
  $region22: #{_gru_forward.1} parent=0 // pred_check
    _
  $region23: #{_gru_forward.1} parent=0 // pred_check_branch
    %24 = sbr.rel (0) target = $region25
  $region24: #{_gru_forward.1} parent=0 // pred_region
    _
  $region25: #{_gru_forward.1} parent=0 // pred_fallthru
    _
  %v25 = vld [vmem:[%s0] sm:$0xff]
  %v26 = vld [vmem:[%s0 + $0x8] sm:$0xff]
  %v27 = vld [vmem:[%s0 + $0x10] sm:$0xff]
  %v28 = vld [vmem:[%s0 + $0x18] sm:$0xff]
  %v29 = vld [vmem:[%s0 + $0x20] sm:$0xff]
  %v30 = vld [vmem:[%s0 + $0x28] sm:$0xff]
  %v31 = vld [vmem:[%s0 + $0x30] sm:$0xff]
  %v32 = vld [vmem:[%s0 + $0x38] sm:$0xff]
  %v33 = vld [vmem:[%s3] sm:$0x3]
  %v34 = vld [vmem:[%s4] sm:$0xff]
  %v35 = vld [vmem:[%s4 + $0x8] sm:$0xff]
  %v36 = vlaneseq
  %v37 = vshrl.u32 %v36, 7
  %v38 = vsub.s32 0, %v37
  %v39 = vrot.slane %v33, %v38
  %vm40 = vcmask 130048
  %v42 = vsel %vm40, %v25, 0
  %v45 = vsel %vm40, %v26, 0
  %v48 = vsel %vm40, %v27, 0
  %v51 = vsel %vm40, %v28, 0
  %v54 = vsel %vm40, %v29, 0
  %v57 = vsel %vm40, %v30, 0
  %v60 = vsel %vm40, %v31, 0
  %v63 = vsel %vm40, %v32, 0
  %65 = vmatprep.subr.mxu0 0.0
  %66 = vmatpush1.msra.mxu0 0.0
  %67 = vmatprep.subr.mxu0 0.0
  %68 = vmatpush1.msra.mxu0 0.0
  %69 = vmatprep.subr.mxu0 0.0
  %70 = vmatpush1.msra.mxu0 0.0
  %71 = vmatprep.subr.mxu0 0.0
  %72 = vmatpush1.msra.mxu0 0.0
  %73 = vmatprep.subr.mxu0 0.0
  %74 = vmatpush1.msra.mxu0 0.0
  %75 = vmatprep.subr.mxu0 0.0
  %76 = vmatpush1.msra.mxu0 0.0
  %77 = vmatprep.subr.mxu0 0.0
  %78 = vmatpush1.msra.mxu0 0.0
  %79 = vmatprep.subr.mxu0 0.0
  %80 = vmatpush1.msra.mxu0 0.0
  %81 = vmatprep.subr.mxu0 0.0
  %82 = vmatpush1.msra.mxu0 0.0
  %83 = vmatprep.subr.mxu0 0.0
  %84 = vmatpush1.msra.mxu0 0.0
  %85 = vmatprep.subr.mxu0 0.0
  %86 = vmatpush1.msra.mxu0 0.0
  %87 = vmatprep.subr.mxu0 0.0
  %88 = vmatpush1.msra.mxu0 0.0
  %89 = vmatprep.subr.mxu0 0.0
  %90 = vmatpush1.msra.mxu0 0.0
  %91 = vmatprep.subr.mxu0 0.0
  %92 = vmatpush1.msra.mxu0 0.0
  %93 = vmatprep.subr.mxu0 0.0
  %94 = vmatpush1.msra.mxu0 %v35
  %95 = vmatprep.subr.mxu0 0.0
  %96 = vmatpush1.msra.mxu0 %v34
  %97 = vmatprep.subr.mxu0 0.0
  %98 = vmatpush2.msra.mxu0 0.0
  %99 = vmatprep.subr.mxu0 0.0
  %100 = vmatpush2.msra.mxu0 0.0
  %101 = vmatprep.subr.mxu0 0.0
  %102 = vmatpush2.msra.mxu0 0.0
  %103 = vmatprep.subr.mxu0 0.0
  %104 = vmatpush2.msra.mxu0 0.0
  %105 = vmatprep.subr.mxu0 0.0
  %106 = vmatpush2.msra.mxu0 0.0
  %107 = vmatprep.subr.mxu0 0.0
  %108 = vmatpush2.msra.mxu0 0.0
  %109 = vmatprep.subr.mxu0 0.0
  %110 = vmatpush2.msra.mxu0 0.0
  %111 = vmatprep.subr.mxu0 0.0
  %112 = vmatpush2.msra.mxu0 0.0
  %113 = vmatprep.subr.mxu0 0.0
  %114 = vmatpush2.msra.mxu0 0.0
  %115 = vmatprep.subr.mxu0 0.0
  %116 = vmatpush2.msra.mxu0 0.0
  %117 = vmatprep.subr.mxu0 0.0
  %118 = vmatpush2.msra.mxu0 0.0
  %119 = vmatprep.subr.mxu0 0.0
  %120 = vmatpush2.msra.mxu0 0.0
  %121 = vmatprep.subr.mxu0 0.0
  %122 = vmatpush2.msra.mxu0 0.0
  %123 = vmatprep.subr.mxu0 0.0
  %124 = vmatpush2.msra.mxu0 0.0
  %125 = vmatprep.subr.mxu0 0.0
  %126 = vmatpush2.msra.mxu0 0.0
  %127 = vmatprep.subr.mxu0 0.0
  %128 = vmatpush2.msra.mxu0 0.0
  %129 = vmatprep.mubr.f32.mxu0 0.0
  %130 = vmatmul.mubr.f32.gmra.mxu0 %v42
  %v131 = vpop.f32.mrf.mxu0
  %v132 = vadd.f32 %v39, %v131
  %v133 = vpop.f32.mrf.mxu0
  %134 = vmatprep.mubr.f32.mxu0 0.0
  %135 = vmatmul.mubr.f32.gmra.mxu0 %v45
  %v136 = vpop.f32.mrf.mxu0
  %v137 = vadd.f32 %v39, %v136
  %v138 = vpop.f32.mrf.mxu0
  %139 = vmatprep.mubr.f32.mxu0 0.0
  %140 = vmatmul.mubr.f32.gmra.mxu0 %v48
  %v141 = vpop.f32.mrf.mxu0
  %v142 = vadd.f32 %v39, %v141
  %v143 = vpop.f32.mrf.mxu0
  %144 = vmatprep.mubr.f32.mxu0 0.0
  %145 = vmatmul.mubr.f32.gmra.mxu0 %v51
  %v146 = vpop.f32.mrf.mxu0
  %v147 = vadd.f32 %v39, %v146
  %v148 = vpop.f32.mrf.mxu0
  %149 = vmatprep.mubr.f32.mxu0 0.0
  %150 = vmatmul.mubr.f32.gmra.mxu0 %v54
  %v151 = vpop.f32.mrf.mxu0
  %v152 = vadd.f32 %v39, %v151
  %v153 = vpop.f32.mrf.mxu0
  %154 = vmatprep.mubr.f32.mxu0 0.0
  %155 = vmatmul.mubr.f32.gmra.mxu0 %v57
  %v156 = vpop.f32.mrf.mxu0
  %v157 = vadd.f32 %v39, %v156
  %v158 = vpop.f32.mrf.mxu0
  %159 = vmatprep.mubr.f32.mxu0 0.0
  %160 = vmatmul.mubr.f32.gmra.mxu0 %v60
  %v161 = vpop.f32.mrf.mxu0
  %v162 = vadd.f32 %v39, %v161
  %v163 = vpop.f32.mrf.mxu0
  %164 = vmatprep.mubr.f32.mxu0 0.0
  %165 = vmatmul.mubr.f32.gmra.mxu0 %v63
  %v166 = vpop.f32.mrf.mxu0
  %v167 = vadd.f32 %v39, %v166
  %v168 = vpop.f32.mrf.mxu0
  %169 = vdwg.mxu0
  %vm170 = vcmask 785408
  %171 = vst.msk [vmem:[#allocation2] sm:$0xff] %vm170, %v132
  %172 = vst.msk [vmem:[#allocation2 + $0x8] sm:$0xff] %vm170, %v137
  %173 = vst.msk [vmem:[#allocation2 + $0x10] sm:$0xff] %vm170, %v142
  %174 = vst.msk [vmem:[#allocation2 + $0x18] sm:$0xff] %vm170, %v147
  %175 = vst.msk [vmem:[#allocation2 + $0x20] sm:$0xff] %vm170, %v152
  %176 = vst.msk [vmem:[#allocation2 + $0x28] sm:$0xff] %vm170, %v157
  %177 = vst.msk [vmem:[#allocation2 + $0x30] sm:$0xff] %vm170, %v162
  %178 = vst.msk [vmem:[#allocation2 + $0x38] sm:$0xff] %vm170, %v167
  %v179 = vld [vmem:[%s2] sm:$0xff]
  %v180 = vld [vmem:[%s2 + $0x8] sm:$0xff]
  %v181 = vld [vmem:[%s2 + $0x10] sm:$0xff]
  %v182 = vld [vmem:[%s2 + $0x18] sm:$0xff]
  %v183 = vld [vmem:[%s1] sm:$0xff]
  %v184 = vld [vmem:[#allocation2] sm:$0xff]
  %v185 = vlaneseq
  %v186 = vshrl.u32 %v185, 7
  %v187 = vsub.s32 1, %v186
  %v188 = vrot.slane %v33, %v187
  %vm189 = vcmask 261120
  %v191 = vsel %vm189, %v183, 0
  %193 = vmatprep.subr.mxu0 0.0
  %194 = vmatpush1.msra.mxu0 0.0
  %195 = vmatprep.subr.mxu0 0.0
  %196 = vmatpush1.msra.mxu0 0.0
  %197 = vmatprep.subr.mxu0 0.0
  %198 = vmatpush1.msra.mxu0 0.0
  %199 = vmatprep.subr.mxu0 0.0
  %200 = vmatpush1.msra.mxu0 0.0
  %201 = vmatprep.subr.mxu0 0.0
  %202 = vmatpush1.msra.mxu0 0.0
  %203 = vmatprep.subr.mxu0 0.0
  %204 = vmatpush1.msra.mxu0 0.0
  %205 = vmatprep.subr.mxu0 0.0
  %206 = vmatpush1.msra.mxu0 0.0
  %207 = vmatprep.subr.mxu0 0.0
  %208 = vmatpush1.msra.mxu0 0.0
  %209 = vmatprep.subr.mxu0 0.0
  %210 = vmatpush1.msra.mxu0 0.0
  %211 = vmatprep.subr.mxu0 0.0
  %212 = vmatpush1.msra.mxu0 0.0
  %213 = vmatprep.subr.mxu0 0.0
  %214 = vmatpush1.msra.mxu0 0.0
  %215 = vmatprep.subr.mxu0 0.0
  %216 = vmatpush1.msra.mxu0 0.0
  %217 = vmatprep.subr.mxu0 0.0
  %218 = vmatpush1.msra.mxu0 %v182
  %219 = vmatprep.subr.mxu0 0.0
  %220 = vmatpush1.msra.mxu0 %v181
  %221 = vmatprep.subr.mxu0 0.0
  %222 = vmatpush1.msra.mxu0 %v180
  %223 = vmatprep.subr.mxu0 0.0
  %224 = vmatpush1.msra.mxu0 %v179
  %225 = vmatprep.subr.mxu0 0.0
  %226 = vmatpush2.msra.mxu0 0.0
  %227 = vmatprep.subr.mxu0 0.0
  %228 = vmatpush2.msra.mxu0 0.0
  %229 = vmatprep.subr.mxu0 0.0
  %230 = vmatpush2.msra.mxu0 0.0
  %231 = vmatprep.subr.mxu0 0.0
  %232 = vmatpush2.msra.mxu0 0.0
  %233 = vmatprep.subr.mxu0 0.0
  %234 = vmatpush2.msra.mxu0 0.0
  %235 = vmatprep.subr.mxu0 0.0
  %236 = vmatpush2.msra.mxu0 0.0
  %237 = vmatprep.subr.mxu0 0.0
  %238 = vmatpush2.msra.mxu0 0.0
  %239 = vmatprep.subr.mxu0 0.0
  %240 = vmatpush2.msra.mxu0 0.0
  %241 = vmatprep.subr.mxu0 0.0
  %242 = vmatpush2.msra.mxu0 0.0
  %243 = vmatprep.subr.mxu0 0.0
  %244 = vmatpush2.msra.mxu0 0.0
  %245 = vmatprep.subr.mxu0 0.0
  %246 = vmatpush2.msra.mxu0 0.0
  %247 = vmatprep.subr.mxu0 0.0
  %248 = vmatpush2.msra.mxu0 0.0
  %249 = vmatprep.subr.mxu0 0.0
  %250 = vmatpush2.msra.mxu0 0.0
  %251 = vmatprep.subr.mxu0 0.0
  %252 = vmatpush2.msra.mxu0 0.0
  %253 = vmatprep.subr.mxu0 0.0
  %254 = vmatpush2.msra.mxu0 0.0
  %255 = vmatprep.subr.mxu0 0.0
  %256 = vmatpush2.msra.mxu0 0.0
  %257 = vmatprep.mubr.f32.mxu0 0.0
  %258 = vmatmul.mubr.f32.gmra.mxu0 %v191
  %v259 = vpop.f32.mrf.mxu0
  %v260 = vadd.f32 %v188, %v259
  %v261 = vpop.f32.mrf.mxu0
  %262 = vdwg.mxu0
  %v263 = vadd.f32 %v184, %v260
  %v264 = vxor.u32 %v263, 2147483648
  %v265 = vmul.f32 %v264, 1.442695
  %v266 = vpow.pop %v265
  %v267 = vadd.f32 %v266, 1.0
  %v268 = vrcp.pop %v267
  %v269 = vmul.f32 1.0, %v268
  %271 = vrot.lane.b32.xlu0 %v260, 64
  %v272 = vpop.permute.xlu0 %271
  %v274 = vmul.f32 %v269, %v272
  %276 = vrot.lane.b32.xlu0 %v274, 64
  %v277 = vpop.permute.xlu0 %276
  %v279 = vadd.f32 %v184, %v277
  %v280 = vtanh.pop %v279
  %v281 = vsub.f32 1.0, %v269
  %283 = vrot.lane.b32.xlu0 %v280, 96
  %v284 = vpop.permute.xlu0 %283
  %v286 = vmul.f32 %v281, %v284
  %287 = vrot.lane.b32.xlu0 %v183, 32
  %v288 = vpop.permute.xlu0 %287
  %v290 = vmul.f32 %v269, %v288
  %v291 = vadd.f32 %v286, %v290
  %293 = vrot.lane.b32.xlu0 %v291, 96
  %v294 = vpop.permute.xlu0 %293
  %296 = vst.msk [vmem:[#allocation3] sm:$0xff] %vm189, %v294
  %v297 = vld [vmem:[#allocation2 + $0x8] sm:$0xff]
  %v298 = vsel %vm189, %v294, 0
  %300 = vmatprep.subr.mxu0 0.0
  %301 = vmatpush1.msra.mxu0 0.0
  %302 = vmatprep.subr.mxu0 0.0
  %303 = vmatpush1.msra.mxu0 0.0
  %304 = vmatprep.subr.mxu0 0.0
  %305 = vmatpush1.msra.mxu0 0.0
  %306 = vmatprep.subr.mxu0 0.0
  %307 = vmatpush1.msra.mxu0 0.0
  %308 = vmatprep.subr.mxu0 0.0
  %309 = vmatpush1.msra.mxu0 0.0
  %310 = vmatprep.subr.mxu0 0.0
  %311 = vmatpush1.msra.mxu0 0.0
  %312 = vmatprep.subr.mxu0 0.0
  %313 = vmatpush1.msra.mxu0 0.0
  %314 = vmatprep.subr.mxu0 0.0
  %315 = vmatpush1.msra.mxu0 0.0
  %316 = vmatprep.subr.mxu0 0.0
  %317 = vmatpush1.msra.mxu0 0.0
  %318 = vmatprep.subr.mxu0 0.0
  %319 = vmatpush1.msra.mxu0 0.0
  %320 = vmatprep.subr.mxu0 0.0
  %321 = vmatpush1.msra.mxu0 0.0
  %322 = vmatprep.subr.mxu0 0.0
  %323 = vmatpush1.msra.mxu0 0.0
  %324 = vmatprep.subr.mxu0 0.0
  %325 = vmatpush1.msra.mxu0 %v182
  %326 = vmatprep.subr.mxu0 0.0
  %327 = vmatpush1.msra.mxu0 %v181
  %328 = vmatprep.subr.mxu0 0.0
  %329 = vmatpush1.msra.mxu0 %v180
  %330 = vmatprep.subr.mxu0 0.0
  %331 = vmatpush1.msra.mxu0 %v179
  %332 = vmatprep.subr.mxu0 0.0
  %333 = vmatpush2.msra.mxu0 0.0
  %334 = vmatprep.subr.mxu0 0.0
  %335 = vmatpush2.msra.mxu0 0.0
  %336 = vmatprep.subr.mxu0 0.0
  %337 = vmatpush2.msra.mxu0 0.0
  %338 = vmatprep.subr.mxu0 0.0
  %339 = vmatpush2.msra.mxu0 0.0
  %340 = vmatprep.subr.mxu0 0.0
  %341 = vmatpush2.msra.mxu0 0.0
  %342 = vmatprep.subr.mxu0 0.0
  %343 = vmatpush2.msra.mxu0 0.0
  %344 = vmatprep.subr.mxu0 0.0
  %345 = vmatpush2.msra.mxu0 0.0
  %346 = vmatprep.subr.mxu0 0.0
  %347 = vmatpush2.msra.mxu0 0.0
  %348 = vmatprep.subr.mxu0 0.0
  %349 = vmatpush2.msra.mxu0 0.0
  %350 = vmatprep.subr.mxu0 0.0
  %351 = vmatpush2.msra.mxu0 0.0
  %352 = vmatprep.subr.mxu0 0.0
  %353 = vmatpush2.msra.mxu0 0.0
  %354 = vmatprep.subr.mxu0 0.0
  %355 = vmatpush2.msra.mxu0 0.0
  %356 = vmatprep.subr.mxu0 0.0
  %357 = vmatpush2.msra.mxu0 0.0
  %358 = vmatprep.subr.mxu0 0.0
  %359 = vmatpush2.msra.mxu0 0.0
  %360 = vmatprep.subr.mxu0 0.0
  %361 = vmatpush2.msra.mxu0 0.0
  %362 = vmatprep.subr.mxu0 0.0
  %363 = vmatpush2.msra.mxu0 0.0
  %364 = vmatprep.mubr.f32.mxu0 0.0
  %365 = vmatmul.mubr.f32.gmra.mxu0 %v298
  %v366 = vpop.f32.mrf.mxu0
  %v367 = vadd.f32 %v188, %v366
  %v368 = vpop.f32.mrf.mxu0
  %369 = vdwg.mxu0
  %v370 = vadd.f32 %v297, %v367
  %v371 = vxor.u32 %v370, 2147483648
  %v372 = vmul.f32 %v371, 1.442695
  %v373 = vpow.pop %v372
  %v374 = vadd.f32 %v373, 1.0
  %v375 = vrcp.pop %v374
  %v376 = vmul.f32 1.0, %v375
  %378 = vrot.lane.b32.xlu0 %v367, 64
  %v379 = vpop.permute.xlu0 %378
  %v381 = vmul.f32 %v376, %v379
  %383 = vrot.lane.b32.xlu0 %v381, 64
  %v384 = vpop.permute.xlu0 %383
  %v386 = vadd.f32 %v297, %v384
  %v387 = vtanh.pop %v386
  %v388 = vsub.f32 1.0, %v376
  %390 = vrot.lane.b32.xlu0 %v387, 96
  %v391 = vpop.permute.xlu0 %390
  %v393 = vmul.f32 %v388, %v391
  %v394 = vmul.f32 %v376, %v291
  %v395 = vadd.f32 %v393, %v394
  %397 = vrot.lane.b32.xlu0 %v395, 96
  %v398 = vpop.permute.xlu0 %397
  %400 = vst.msk [vmem:[#allocation3 + $0x8] sm:$0xff] %vm189, %v398
  %v401 = vld [vmem:[#allocation2 + $0x10] sm:$0xff]
  %v402 = vsel %vm189, %v398, 0
  %404 = vmatprep.subr.mxu0 0.0
  %405 = vmatpush1.msra.mxu0 0.0
  %406 = vmatprep.subr.mxu0 0.0
  %407 = vmatpush1.msra.mxu0 0.0
  %408 = vmatprep.subr.mxu0 0.0
  %409 = vmatpush1.msra.mxu0 0.0
  %410 = vmatprep.subr.mxu0 0.0
  %411 = vmatpush1.msra.mxu0 0.0
  %412 = vmatprep.subr.mxu0 0.0
  %413 = vmatpush1.msra.mxu0 0.0
  %414 = vmatprep.subr.mxu0 0.0
  %415 = vmatpush1.msra.mxu0 0.0
  %416 = vmatprep.subr.mxu0 0.0
  %417 = vmatpush1.msra.mxu0 0.0
  %418 = vmatprep.subr.mxu0 0.0
  %419 = vmatpush1.msra.mxu0 0.0
  %420 = vmatprep.subr.mxu0 0.0
  %421 = vmatpush1.msra.mxu0 0.0
  %422 = vmatprep.subr.mxu0 0.0
  %423 = vmatpush1.msra.mxu0 0.0
  %424 = vmatprep.subr.mxu0 0.0
  %425 = vmatpush1.msra.mxu0 0.0
  %426 = vmatprep.subr.mxu0 0.0
  %427 = vmatpush1.msra.mxu0 0.0
  %428 = vmatprep.subr.mxu0 0.0
  %429 = vmatpush1.msra.mxu0 %v182
  %430 = vmatprep.subr.mxu0 0.0
  %431 = vmatpush1.msra.mxu0 %v181
  %432 = vmatprep.subr.mxu0 0.0
  %433 = vmatpush1.msra.mxu0 %v180
  %434 = vmatprep.subr.mxu0 0.0
  %435 = vmatpush1.msra.mxu0 %v179
  %436 = vmatprep.subr.mxu0 0.0
  %437 = vmatpush2.msra.mxu0 0.0
  %438 = vmatprep.subr.mxu0 0.0
  %439 = vmatpush2.msra.mxu0 0.0
  %440 = vmatprep.subr.mxu0 0.0
  %441 = vmatpush2.msra.mxu0 0.0
  %442 = vmatprep.subr.mxu0 0.0
  %443 = vmatpush2.msra.mxu0 0.0
  %444 = vmatprep.subr.mxu0 0.0
  %445 = vmatpush2.msra.mxu0 0.0
  %446 = vmatprep.subr.mxu0 0.0
  %447 = vmatpush2.msra.mxu0 0.0
  %448 = vmatprep.subr.mxu0 0.0
  %449 = vmatpush2.msra.mxu0 0.0
  %450 = vmatprep.subr.mxu0 0.0
  %451 = vmatpush2.msra.mxu0 0.0
  %452 = vmatprep.subr.mxu0 0.0
  %453 = vmatpush2.msra.mxu0 0.0
  %454 = vmatprep.subr.mxu0 0.0
  %455 = vmatpush2.msra.mxu0 0.0
  %456 = vmatprep.subr.mxu0 0.0
  %457 = vmatpush2.msra.mxu0 0.0
  %458 = vmatprep.subr.mxu0 0.0
  %459 = vmatpush2.msra.mxu0 0.0
  %460 = vmatprep.subr.mxu0 0.0
  %461 = vmatpush2.msra.mxu0 0.0
  %462 = vmatprep.subr.mxu0 0.0
  %463 = vmatpush2.msra.mxu0 0.0
  %464 = vmatprep.subr.mxu0 0.0
  %465 = vmatpush2.msra.mxu0 0.0
  %466 = vmatprep.subr.mxu0 0.0
  %467 = vmatpush2.msra.mxu0 0.0
  %468 = vmatprep.mubr.f32.mxu0 0.0
  %469 = vmatmul.mubr.f32.gmra.mxu0 %v402
  %v470 = vpop.f32.mrf.mxu0
  %v471 = vadd.f32 %v188, %v470
  %v472 = vpop.f32.mrf.mxu0
  %473 = vdwg.mxu0
  %v474 = vadd.f32 %v401, %v471
  %v475 = vxor.u32 %v474, 2147483648
  %v476 = vmul.f32 %v475, 1.442695
  %v477 = vpow.pop %v476
  %v478 = vadd.f32 %v477, 1.0
  %v479 = vrcp.pop %v478
  %v480 = vmul.f32 1.0, %v479
  %482 = vrot.lane.b32.xlu0 %v471, 64
  %v483 = vpop.permute.xlu0 %482
  %v485 = vmul.f32 %v480, %v483
  %487 = vrot.lane.b32.xlu0 %v485, 64
  %v488 = vpop.permute.xlu0 %487
  %v490 = vadd.f32 %v401, %v488
  %v491 = vtanh.pop %v490
  %v492 = vsub.f32 1.0, %v480
  %494 = vrot.lane.b32.xlu0 %v491, 96
  %v495 = vpop.permute.xlu0 %494
  %v497 = vmul.f32 %v492, %v495
  %v498 = vmul.f32 %v480, %v395
  %v499 = vadd.f32 %v497, %v498
  %501 = vrot.lane.b32.xlu0 %v499, 96
  %v502 = vpop.permute.xlu0 %501
  %504 = vst.msk [vmem:[#allocation3 + $0x10] sm:$0xff] %vm189, %v502
  %v505 = vld [vmem:[#allocation2 + $0x18] sm:$0xff]
  %v506 = vsel %vm189, %v502, 0
  %508 = vmatprep.subr.mxu0 0.0
  %509 = vmatpush1.msra.mxu0 0.0
  %510 = vmatprep.subr.mxu0 0.0
  %511 = vmatpush1.msra.mxu0 0.0
  %512 = vmatprep.subr.mxu0 0.0
  %513 = vmatpush1.msra.mxu0 0.0
  %514 = vmatprep.subr.mxu0 0.0
  %515 = vmatpush1.msra.mxu0 0.0
  %516 = vmatprep.subr.mxu0 0.0
  %517 = vmatpush1.msra.mxu0 0.0
  %518 = vmatprep.subr.mxu0 0.0
  %519 = vmatpush1.msra.mxu0 0.0
  %520 = vmatprep.subr.mxu0 0.0
  %521 = vmatpush1.msra.mxu0 0.0
  %522 = vmatprep.subr.mxu0 0.0
  %523 = vmatpush1.msra.mxu0 0.0
  %524 = vmatprep.subr.mxu0 0.0
  %525 = vmatpush1.msra.mxu0 0.0
  %526 = vmatprep.subr.mxu0 0.0
  %527 = vmatpush1.msra.mxu0 0.0
  %528 = vmatprep.subr.mxu0 0.0
  %529 = vmatpush1.msra.mxu0 0.0
  %530 = vmatprep.subr.mxu0 0.0
  %531 = vmatpush1.msra.mxu0 0.0
  %532 = vmatprep.subr.mxu0 0.0
  %533 = vmatpush1.msra.mxu0 %v182
  %534 = vmatprep.subr.mxu0 0.0
  %535 = vmatpush1.msra.mxu0 %v181
  %536 = vmatprep.subr.mxu0 0.0
  %537 = vmatpush1.msra.mxu0 %v180
  %538 = vmatprep.subr.mxu0 0.0
  %539 = vmatpush1.msra.mxu0 %v179
  %540 = vmatprep.subr.mxu0 0.0
  %541 = vmatpush2.msra.mxu0 0.0
  %542 = vmatprep.subr.mxu0 0.0
  %543 = vmatpush2.msra.mxu0 0.0
  %544 = vmatprep.subr.mxu0 0.0
  %545 = vmatpush2.msra.mxu0 0.0
  %546 = vmatprep.subr.mxu0 0.0
  %547 = vmatpush2.msra.mxu0 0.0
  %548 = vmatprep.subr.mxu0 0.0
  %549 = vmatpush2.msra.mxu0 0.0
  %550 = vmatprep.subr.mxu0 0.0
  %551 = vmatpush2.msra.mxu0 0.0
  %552 = vmatprep.subr.mxu0 0.0
  %553 = vmatpush2.msra.mxu0 0.0
  %554 = vmatprep.subr.mxu0 0.0
  %555 = vmatpush2.msra.mxu0 0.0
  %556 = vmatprep.subr.mxu0 0.0
  %557 = vmatpush2.msra.mxu0 0.0
  %558 = vmatprep.subr.mxu0 0.0
  %559 = vmatpush2.msra.mxu0 0.0
  %560 = vmatprep.subr.mxu0 0.0
  %561 = vmatpush2.msra.mxu0 0.0
  %562 = vmatprep.subr.mxu0 0.0
  %563 = vmatpush2.msra.mxu0 0.0
  %564 = vmatprep.subr.mxu0 0.0
  %565 = vmatpush2.msra.mxu0 0.0
  %566 = vmatprep.subr.mxu0 0.0
  %567 = vmatpush2.msra.mxu0 0.0
  %568 = vmatprep.subr.mxu0 0.0
  %569 = vmatpush2.msra.mxu0 0.0
  %570 = vmatprep.subr.mxu0 0.0
  %571 = vmatpush2.msra.mxu0 0.0
  %572 = vmatprep.mubr.f32.mxu0 0.0
  %573 = vmatmul.mubr.f32.gmra.mxu0 %v506
  %v574 = vpop.f32.mrf.mxu0
  %v575 = vadd.f32 %v188, %v574
  %v576 = vpop.f32.mrf.mxu0
  %577 = vdwg.mxu0
  %v578 = vadd.f32 %v505, %v575
  %v579 = vxor.u32 %v578, 2147483648
  %v580 = vmul.f32 %v579, 1.442695
  %v581 = vpow.pop %v580
  %v582 = vadd.f32 %v581, 1.0
  %v583 = vrcp.pop %v582
  %v584 = vmul.f32 1.0, %v583
  %586 = vrot.lane.b32.xlu0 %v575, 64
  %v587 = vpop.permute.xlu0 %586
  %v589 = vmul.f32 %v584, %v587
  %591 = vrot.lane.b32.xlu0 %v589, 64
  %v592 = vpop.permute.xlu0 %591
  %v594 = vadd.f32 %v505, %v592
  %v595 = vtanh.pop %v594
  %v596 = vsub.f32 1.0, %v584
  %598 = vrot.lane.b32.xlu0 %v595, 96
  %v599 = vpop.permute.xlu0 %598
  %v601 = vmul.f32 %v596, %v599
  %v602 = vmul.f32 %v584, %v499
  %v603 = vadd.f32 %v601, %v602
  %605 = vrot.lane.b32.xlu0 %v603, 96
  %v606 = vpop.permute.xlu0 %605
  %608 = vst.msk [vmem:[#allocation3 + $0x18] sm:$0xff] %vm189, %v606
  %v609 = vld [vmem:[#allocation2 + $0x20] sm:$0xff]
  %v610 = vsel %vm189, %v606, 0
  %612 = vmatprep.subr.mxu0 0.0
  %613 = vmatpush1.msra.mxu0 0.0
  %614 = vmatprep.subr.mxu0 0.0
  %615 = vmatpush1.msra.mxu0 0.0
  %616 = vmatprep.subr.mxu0 0.0
  %617 = vmatpush1.msra.mxu0 0.0
  %618 = vmatprep.subr.mxu0 0.0
  %619 = vmatpush1.msra.mxu0 0.0
  %620 = vmatprep.subr.mxu0 0.0
  %621 = vmatpush1.msra.mxu0 0.0
  %622 = vmatprep.subr.mxu0 0.0
  %623 = vmatpush1.msra.mxu0 0.0
  %624 = vmatprep.subr.mxu0 0.0
  %625 = vmatpush1.msra.mxu0 0.0
  %626 = vmatprep.subr.mxu0 0.0
  %627 = vmatpush1.msra.mxu0 0.0
  %628 = vmatprep.subr.mxu0 0.0
  %629 = vmatpush1.msra.mxu0 0.0
  %630 = vmatprep.subr.mxu0 0.0
  %631 = vmatpush1.msra.mxu0 0.0
  %632 = vmatprep.subr.mxu0 0.0
  %633 = vmatpush1.msra.mxu0 0.0
  %634 = vmatprep.subr.mxu0 0.0
  %635 = vmatpush1.msra.mxu0 0.0
  %636 = vmatprep.subr.mxu0 0.0
  %637 = vmatpush1.msra.mxu0 %v182
  %638 = vmatprep.subr.mxu0 0.0
  %639 = vmatpush1.msra.mxu0 %v181
  %640 = vmatprep.subr.mxu0 0.0
  %641 = vmatpush1.msra.mxu0 %v180
  %642 = vmatprep.subr.mxu0 0.0
  %643 = vmatpush1.msra.mxu0 %v179
  %644 = vmatprep.subr.mxu0 0.0
  %645 = vmatpush2.msra.mxu0 0.0
  %646 = vmatprep.subr.mxu0 0.0
  %647 = vmatpush2.msra.mxu0 0.0
  %648 = vmatprep.subr.mxu0 0.0
  %649 = vmatpush2.msra.mxu0 0.0
  %650 = vmatprep.subr.mxu0 0.0
  %651 = vmatpush2.msra.mxu0 0.0
  %652 = vmatprep.subr.mxu0 0.0
  %653 = vmatpush2.msra.mxu0 0.0
  %654 = vmatprep.subr.mxu0 0.0
  %655 = vmatpush2.msra.mxu0 0.0
  %656 = vmatprep.subr.mxu0 0.0
  %657 = vmatpush2.msra.mxu0 0.0
  %658 = vmatprep.subr.mxu0 0.0
  %659 = vmatpush2.msra.mxu0 0.0
  %660 = vmatprep.subr.mxu0 0.0
  %661 = vmatpush2.msra.mxu0 0.0
  %662 = vmatprep.subr.mxu0 0.0
  %663 = vmatpush2.msra.mxu0 0.0
  %664 = vmatprep.subr.mxu0 0.0
  %665 = vmatpush2.msra.mxu0 0.0
  %666 = vmatprep.subr.mxu0 0.0
  %667 = vmatpush2.msra.mxu0 0.0
  %668 = vmatprep.subr.mxu0 0.0
  %669 = vmatpush2.msra.mxu0 0.0
  %670 = vmatprep.subr.mxu0 0.0
  %671 = vmatpush2.msra.mxu0 0.0
  %672 = vmatprep.subr.mxu0 0.0
  %673 = vmatpush2.msra.mxu0 0.0
  %674 = vmatprep.subr.mxu0 0.0
  %675 = vmatpush2.msra.mxu0 0.0
  %676 = vmatprep.mubr.f32.mxu0 0.0
  %677 = vmatmul.mubr.f32.gmra.mxu0 %v610
  %v678 = vpop.f32.mrf.mxu0
  %v679 = vadd.f32 %v188, %v678
  %v680 = vpop.f32.mrf.mxu0
  %681 = vdwg.mxu0
  %v682 = vadd.f32 %v609, %v679
  %v683 = vxor.u32 %v682, 2147483648
  %v684 = vmul.f32 %v683, 1.442695
  %v685 = vpow.pop %v684
  %v686 = vadd.f32 %v685, 1.0
  %v687 = vrcp.pop %v686
  %v688 = vmul.f32 1.0, %v687
  %690 = vrot.lane.b32.xlu0 %v679, 64
  %v691 = vpop.permute.xlu0 %690
  %v693 = vmul.f32 %v688, %v691
  %695 = vrot.lane.b32.xlu0 %v693, 64
  %v696 = vpop.permute.xlu0 %695
  %v698 = vadd.f32 %v609, %v696
  %v699 = vtanh.pop %v698
  %v700 = vsub.f32 1.0, %v688
  %702 = vrot.lane.b32.xlu0 %v699, 96
  %v703 = vpop.permute.xlu0 %702
  %v705 = vmul.f32 %v700, %v703
  %v706 = vmul.f32 %v688, %v603
  %v707 = vadd.f32 %v705, %v706
  %709 = vrot.lane.b32.xlu0 %v707, 96
  %v710 = vpop.permute.xlu0 %709
  %712 = vst.msk [vmem:[#allocation3 + $0x20] sm:$0xff] %vm189, %v710
  %v713 = vld [vmem:[#allocation2 + $0x28] sm:$0xff]
  %v714 = vsel %vm189, %v710, 0
  %716 = vmatprep.subr.mxu0 0.0
  %717 = vmatpush1.msra.mxu0 0.0
  %718 = vmatprep.subr.mxu0 0.0
  %719 = vmatpush1.msra.mxu0 0.0
  %720 = vmatprep.subr.mxu0 0.0
  %721 = vmatpush1.msra.mxu0 0.0
  %722 = vmatprep.subr.mxu0 0.0
  %723 = vmatpush1.msra.mxu0 0.0
  %724 = vmatprep.subr.mxu0 0.0
  %725 = vmatpush1.msra.mxu0 0.0
  %726 = vmatprep.subr.mxu0 0.0
  %727 = vmatpush1.msra.mxu0 0.0
  %728 = vmatprep.subr.mxu0 0.0
  %729 = vmatpush1.msra.mxu0 0.0
  %730 = vmatprep.subr.mxu0 0.0
  %731 = vmatpush1.msra.mxu0 0.0
  %732 = vmatprep.subr.mxu0 0.0
  %733 = vmatpush1.msra.mxu0 0.0
  %734 = vmatprep.subr.mxu0 0.0
  %735 = vmatpush1.msra.mxu0 0.0
  %736 = vmatprep.subr.mxu0 0.0
  %737 = vmatpush1.msra.mxu0 0.0
  %738 = vmatprep.subr.mxu0 0.0
  %739 = vmatpush1.msra.mxu0 0.0
  %740 = vmatprep.subr.mxu0 0.0
  %741 = vmatpush1.msra.mxu0 %v182
  %742 = vmatprep.subr.mxu0 0.0
  %743 = vmatpush1.msra.mxu0 %v181
  %744 = vmatprep.subr.mxu0 0.0
  %745 = vmatpush1.msra.mxu0 %v180
  %746 = vmatprep.subr.mxu0 0.0
  %747 = vmatpush1.msra.mxu0 %v179
  %748 = vmatprep.subr.mxu0 0.0
  %749 = vmatpush2.msra.mxu0 0.0
  %750 = vmatprep.subr.mxu0 0.0
  %751 = vmatpush2.msra.mxu0 0.0
  %752 = vmatprep.subr.mxu0 0.0
  %753 = vmatpush2.msra.mxu0 0.0
  %754 = vmatprep.subr.mxu0 0.0
  %755 = vmatpush2.msra.mxu0 0.0
  %756 = vmatprep.subr.mxu0 0.0
  %757 = vmatpush2.msra.mxu0 0.0
  %758 = vmatprep.subr.mxu0 0.0
  %759 = vmatpush2.msra.mxu0 0.0
  %760 = vmatprep.subr.mxu0 0.0
  %761 = vmatpush2.msra.mxu0 0.0
  %762 = vmatprep.subr.mxu0 0.0
  %763 = vmatpush2.msra.mxu0 0.0
  %764 = vmatprep.subr.mxu0 0.0
  %765 = vmatpush2.msra.mxu0 0.0
  %766 = vmatprep.subr.mxu0 0.0
  %767 = vmatpush2.msra.mxu0 0.0
  %768 = vmatprep.subr.mxu0 0.0
  %769 = vmatpush2.msra.mxu0 0.0
  %770 = vmatprep.subr.mxu0 0.0
  %771 = vmatpush2.msra.mxu0 0.0
  %772 = vmatprep.subr.mxu0 0.0
  %773 = vmatpush2.msra.mxu0 0.0
  %774 = vmatprep.subr.mxu0 0.0
  %775 = vmatpush2.msra.mxu0 0.0
  %776 = vmatprep.subr.mxu0 0.0
  %777 = vmatpush2.msra.mxu0 0.0
  %778 = vmatprep.subr.mxu0 0.0
  %779 = vmatpush2.msra.mxu0 0.0
  %780 = vmatprep.mubr.f32.mxu0 0.0
  %781 = vmatmul.mubr.f32.gmra.mxu0 %v714
  %v782 = vpop.f32.mrf.mxu0
  %v783 = vadd.f32 %v188, %v782
  %v784 = vpop.f32.mrf.mxu0
  %785 = vdwg.mxu0
  %v786 = vadd.f32 %v713, %v783
  %v787 = vxor.u32 %v786, 2147483648
  %v788 = vmul.f32 %v787, 1.442695
  %v789 = vpow.pop %v788
  %v790 = vadd.f32 %v789, 1.0
  %v791 = vrcp.pop %v790
  %v792 = vmul.f32 1.0, %v791
  %794 = vrot.lane.b32.xlu0 %v783, 64
  %v795 = vpop.permute.xlu0 %794
  %v797 = vmul.f32 %v792, %v795
  %799 = vrot.lane.b32.xlu0 %v797, 64
  %v800 = vpop.permute.xlu0 %799
  %v802 = vadd.f32 %v713, %v800
  %v803 = vtanh.pop %v802
  %v804 = vsub.f32 1.0, %v792
  %806 = vrot.lane.b32.xlu0 %v803, 96
  %v807 = vpop.permute.xlu0 %806
  %v809 = vmul.f32 %v804, %v807
  %v810 = vmul.f32 %v792, %v707
  %v811 = vadd.f32 %v809, %v810
  %813 = vrot.lane.b32.xlu0 %v811, 96
  %v814 = vpop.permute.xlu0 %813
  %816 = vst.msk [vmem:[#allocation3 + $0x28] sm:$0xff] %vm189, %v814
  %v817 = vld [vmem:[#allocation2 + $0x30] sm:$0xff]
  %v818 = vsel %vm189, %v814, 0
  %820 = vmatprep.subr.mxu0 0.0
  %821 = vmatpush1.msra.mxu0 0.0
  %822 = vmatprep.subr.mxu0 0.0
  %823 = vmatpush1.msra.mxu0 0.0
  %824 = vmatprep.subr.mxu0 0.0
  %825 = vmatpush1.msra.mxu0 0.0
  %826 = vmatprep.subr.mxu0 0.0
  %827 = vmatpush1.msra.mxu0 0.0
  %828 = vmatprep.subr.mxu0 0.0
  %829 = vmatpush1.msra.mxu0 0.0
  %830 = vmatprep.subr.mxu0 0.0
  %831 = vmatpush1.msra.mxu0 0.0
  %832 = vmatprep.subr.mxu0 0.0
  %833 = vmatpush1.msra.mxu0 0.0
  %834 = vmatprep.subr.mxu0 0.0
  %835 = vmatpush1.msra.mxu0 0.0
  %836 = vmatprep.subr.mxu0 0.0
  %837 = vmatpush1.msra.mxu0 0.0
  %838 = vmatprep.subr.mxu0 0.0
  %839 = vmatpush1.msra.mxu0 0.0
  %840 = vmatprep.subr.mxu0 0.0
  %841 = vmatpush1.msra.mxu0 0.0
  %842 = vmatprep.subr.mxu0 0.0
  %843 = vmatpush1.msra.mxu0 0.0
  %844 = vmatprep.subr.mxu0 0.0
  %845 = vmatpush1.msra.mxu0 %v182
  %846 = vmatprep.subr.mxu0 0.0
  %847 = vmatpush1.msra.mxu0 %v181
  %848 = vmatprep.subr.mxu0 0.0
  %849 = vmatpush1.msra.mxu0 %v180
  %850 = vmatprep.subr.mxu0 0.0
  %851 = vmatpush1.msra.mxu0 %v179
  %852 = vmatprep.subr.mxu0 0.0
  %853 = vmatpush2.msra.mxu0 0.0
  %854 = vmatprep.subr.mxu0 0.0
  %855 = vmatpush2.msra.mxu0 0.0
  %856 = vmatprep.subr.mxu0 0.0
  %857 = vmatpush2.msra.mxu0 0.0
  %858 = vmatprep.subr.mxu0 0.0
  %859 = vmatpush2.msra.mxu0 0.0
  %860 = vmatprep.subr.mxu0 0.0
  %861 = vmatpush2.msra.mxu0 0.0
  %862 = vmatprep.subr.mxu0 0.0
  %863 = vmatpush2.msra.mxu0 0.0
  %864 = vmatprep.subr.mxu0 0.0
  %865 = vmatpush2.msra.mxu0 0.0
  %866 = vmatprep.subr.mxu0 0.0
  %867 = vmatpush2.msra.mxu0 0.0
  %868 = vmatprep.subr.mxu0 0.0
  %869 = vmatpush2.msra.mxu0 0.0
  %870 = vmatprep.subr.mxu0 0.0
  %871 = vmatpush2.msra.mxu0 0.0
  %872 = vmatprep.subr.mxu0 0.0
  %873 = vmatpush2.msra.mxu0 0.0
  %874 = vmatprep.subr.mxu0 0.0
  %875 = vmatpush2.msra.mxu0 0.0
  %876 = vmatprep.subr.mxu0 0.0
  %877 = vmatpush2.msra.mxu0 0.0
  %878 = vmatprep.subr.mxu0 0.0
  %879 = vmatpush2.msra.mxu0 0.0
  %880 = vmatprep.subr.mxu0 0.0
  %881 = vmatpush2.msra.mxu0 0.0
  %882 = vmatprep.subr.mxu0 0.0
  %883 = vmatpush2.msra.mxu0 0.0
  %884 = vmatprep.mubr.f32.mxu0 0.0
  %885 = vmatmul.mubr.f32.gmra.mxu0 %v818
  %v886 = vpop.f32.mrf.mxu0
  %v887 = vadd.f32 %v188, %v886
  %v888 = vpop.f32.mrf.mxu0
  %889 = vdwg.mxu0
  %v890 = vadd.f32 %v817, %v887
  %v891 = vxor.u32 %v890, 2147483648
  %v892 = vmul.f32 %v891, 1.442695
  %v893 = vpow.pop %v892
  %v894 = vadd.f32 %v893, 1.0
  %v895 = vrcp.pop %v894
  %v896 = vmul.f32 1.0, %v895
  %898 = vrot.lane.b32.xlu0 %v887, 64
  %v899 = vpop.permute.xlu0 %898
  %v901 = vmul.f32 %v896, %v899
  %903 = vrot.lane.b32.xlu0 %v901, 64
  %v904 = vpop.permute.xlu0 %903
  %v906 = vadd.f32 %v817, %v904
  %v907 = vtanh.pop %v906
  %v908 = vsub.f32 1.0, %v896
  %910 = vrot.lane.b32.xlu0 %v907, 96
  %v911 = vpop.permute.xlu0 %910
  %v913 = vmul.f32 %v908, %v911
  %v914 = vmul.f32 %v896, %v811
  %v915 = vadd.f32 %v913, %v914
  %917 = vrot.lane.b32.xlu0 %v915, 96
  %v918 = vpop.permute.xlu0 %917
  %920 = vst.msk [vmem:[#allocation3 + $0x30] sm:$0xff] %vm189, %v918
  %v921 = vld [vmem:[#allocation2 + $0x38] sm:$0xff]
  %v922 = vsel %vm189, %v918, 0
  %924 = vmatprep.subr.mxu0 0.0
  %925 = vmatpush1.msra.mxu0 0.0
  %926 = vmatprep.subr.mxu0 0.0
  %927 = vmatpush1.msra.mxu0 0.0
  %928 = vmatprep.subr.mxu0 0.0
  %929 = vmatpush1.msra.mxu0 0.0
  %930 = vmatprep.subr.mxu0 0.0
  %931 = vmatpush1.msra.mxu0 0.0
  %932 = vmatprep.subr.mxu0 0.0
  %933 = vmatpush1.msra.mxu0 0.0
  %934 = vmatprep.subr.mxu0 0.0
  %935 = vmatpush1.msra.mxu0 0.0
  %936 = vmatprep.subr.mxu0 0.0
  %937 = vmatpush1.msra.mxu0 0.0
  %938 = vmatprep.subr.mxu0 0.0
  %939 = vmatpush1.msra.mxu0 0.0
  %940 = vmatprep.subr.mxu0 0.0
  %941 = vmatpush1.msra.mxu0 0.0
  %942 = vmatprep.subr.mxu0 0.0
  %943 = vmatpush1.msra.mxu0 0.0
  %944 = vmatprep.subr.mxu0 0.0
  %945 = vmatpush1.msra.mxu0 0.0
  %946 = vmatprep.subr.mxu0 0.0
  %947 = vmatpush1.msra.mxu0 0.0
  %948 = vmatprep.subr.mxu0 0.0
  %949 = vmatpush1.msra.mxu0 %v182
  %950 = vmatprep.subr.mxu0 0.0
  %951 = vmatpush1.msra.mxu0 %v181
  %952 = vmatprep.subr.mxu0 0.0
  %953 = vmatpush1.msra.mxu0 %v180
  %954 = vmatprep.subr.mxu0 0.0
  %955 = vmatpush1.msra.mxu0 %v179
  %956 = vmatprep.subr.mxu0 0.0
  %957 = vmatpush2.msra.mxu0 0.0
  %958 = vmatprep.subr.mxu0 0.0
  %959 = vmatpush2.msra.mxu0 0.0
  %960 = vmatprep.subr.mxu0 0.0
  %961 = vmatpush2.msra.mxu0 0.0
  %962 = vmatprep.subr.mxu0 0.0
  %963 = vmatpush2.msra.mxu0 0.0
  %964 = vmatprep.subr.mxu0 0.0
  %965 = vmatpush2.msra.mxu0 0.0
  %966 = vmatprep.subr.mxu0 0.0
  %967 = vmatpush2.msra.mxu0 0.0
  %968 = vmatprep.subr.mxu0 0.0
  %969 = vmatpush2.msra.mxu0 0.0
  %970 = vmatprep.subr.mxu0 0.0
  %971 = vmatpush2.msra.mxu0 0.0
  %972 = vmatprep.subr.mxu0 0.0
  %973 = vmatpush2.msra.mxu0 0.0
  %974 = vmatprep.subr.mxu0 0.0
  %975 = vmatpush2.msra.mxu0 0.0
  %976 = vmatprep.subr.mxu0 0.0
  %977 = vmatpush2.msra.mxu0 0.0
  %978 = vmatprep.subr.mxu0 0.0
  %979 = vmatpush2.msra.mxu0 0.0
  %980 = vmatprep.subr.mxu0 0.0
  %981 = vmatpush2.msra.mxu0 0.0
  %982 = vmatprep.subr.mxu0 0.0
  %983 = vmatpush2.msra.mxu0 0.0
  %984 = vmatprep.subr.mxu0 0.0
  %985 = vmatpush2.msra.mxu0 0.0
  %986 = vmatprep.subr.mxu0 0.0
  %987 = vmatpush2.msra.mxu0 0.0
  %988 = vmatprep.mubr.f32.mxu0 0.0
  %989 = vmatmul.mubr.f32.gmra.mxu0 %v922
  %v990 = vpop.f32.mrf.mxu0
  %v991 = vadd.f32 %v188, %v990
  %v992 = vpop.f32.mrf.mxu0
  %993 = vdwg.mxu0
  %v994 = vadd.f32 %v921, %v991
  %v995 = vxor.u32 %v994, 2147483648
  %v996 = vmul.f32 %v995, 1.442695
  %v997 = vpow.pop %v996
  %v998 = vadd.f32 %v997, 1.0
  %v999 = vrcp.pop %v998
  %v1000 = vmul.f32 1.0, %v999
  %1002 = vrot.lane.b32.xlu0 %v991, 64
  %v1003 = vpop.permute.xlu0 %1002
  %v1005 = vmul.f32 %v1000, %v1003
  %1007 = vrot.lane.b32.xlu0 %v1005, 64
  %v1008 = vpop.permute.xlu0 %1007
  %v1010 = vadd.f32 %v921, %v1008
  %v1011 = vtanh.pop %v1010
  %v1012 = vsub.f32 1.0, %v1000
  %1014 = vrot.lane.b32.xlu0 %v1011, 96
  %v1015 = vpop.permute.xlu0 %1014
  %v1017 = vmul.f32 %v1012, %v1015
  %v1018 = vmul.f32 %v1000, %v915
  %v1019 = vadd.f32 %v1017, %v1018
  %1021 = vrot.lane.b32.xlu0 %v1019, 96
  %v1022 = vpop.permute.xlu0 %1021
  %1024 = vst.msk [vmem:[#allocation3 + $0x38] sm:$0xff] %vm189, %v1022
  %1025 = vst.msk [vmem:[%s7] sm:$0xff] %vm189, %v1022
  %v1026 = vld [vmem:[#allocation3] sm:$0xff]
  %v1027 = vld [vmem:[#allocation3 + $0x8] sm:$0xff]
  %v1028 = vld [vmem:[#allocation3 + $0x10] sm:$0xff]
  %v1029 = vld [vmem:[#allocation3 + $0x18] sm:$0xff]
  %v1030 = vld [vmem:[#allocation3 + $0x20] sm:$0xff]
  %v1031 = vld [vmem:[#allocation3 + $0x28] sm:$0xff]
  %v1032 = vld [vmem:[#allocation3 + $0x30] sm:$0xff]
  %v1033 = vld [vmem:[#allocation3 + $0x38] sm:$0xff]
  %s1034 = scalar_lea.vmem %s3, 2
  %v1035 = vld [vmem:[%s1034] sm:$0x3]
  %v1036 = vld [vmem:[%s5] sm:$0xff]
  %v1037 = vld [vmem:[%s5 + $0x8] sm:$0xff]
  %v1038 = vld [vmem:[%s5 + $0x10] sm:$0xff]
  %v1039 = vld [vmem:[%s5 + $0x18] sm:$0xff]
  %v1040 = vlaneseq
  %v1041 = vshrl.u32 %v1040, 7
  %v1042 = vsub.s32 0, %v1041
  %v1043 = vrot.slane %v1035, %v1042
  %v1045 = vsel %vm189, %v1026, 0
  %v1048 = vsel %vm189, %v1027, 0
  %v1051 = vsel %vm189, %v1028, 0
  %v1054 = vsel %vm189, %v1029, 0
  %v1057 = vsel %vm189, %v1030, 0
  %v1060 = vsel %vm189, %v1031, 0
  %v1063 = vsel %vm189, %v1032, 0
  %v1066 = vsel %vm189, %v1033, 0
  %1068 = vmatprep.subr.mxu0 0.0
  %1069 = vmatpush1.msra.mxu0 0.0
  %1070 = vmatprep.subr.mxu0 0.0
  %1071 = vmatpush1.msra.mxu0 0.0
  %1072 = vmatprep.subr.mxu0 0.0
  %1073 = vmatpush1.msra.mxu0 0.0
  %1074 = vmatprep.subr.mxu0 0.0
  %1075 = vmatpush1.msra.mxu0 0.0
  %1076 = vmatprep.subr.mxu0 0.0
  %1077 = vmatpush1.msra.mxu0 0.0
  %1078 = vmatprep.subr.mxu0 0.0
  %1079 = vmatpush1.msra.mxu0 0.0
  %1080 = vmatprep.subr.mxu0 0.0
  %1081 = vmatpush1.msra.mxu0 0.0
  %1082 = vmatprep.subr.mxu0 0.0
  %1083 = vmatpush1.msra.mxu0 0.0
  %1084 = vmatprep.subr.mxu0 0.0
  %1085 = vmatpush1.msra.mxu0 0.0
  %1086 = vmatprep.subr.mxu0 0.0
  %1087 = vmatpush1.msra.mxu0 0.0
  %1088 = vmatprep.subr.mxu0 0.0
  %1089 = vmatpush1.msra.mxu0 0.0
  %1090 = vmatprep.subr.mxu0 0.0
  %1091 = vmatpush1.msra.mxu0 0.0
  %1092 = vmatprep.subr.mxu0 0.0
  %1093 = vmatpush1.msra.mxu0 %v1039
  %1094 = vmatprep.subr.mxu0 0.0
  %1095 = vmatpush1.msra.mxu0 %v1038
  %1096 = vmatprep.subr.mxu0 0.0
  %1097 = vmatpush1.msra.mxu0 %v1037
  %1098 = vmatprep.subr.mxu0 0.0
  %1099 = vmatpush1.msra.mxu0 %v1036
  %1100 = vmatprep.subr.mxu0 0.0
  %1101 = vmatpush2.msra.mxu0 0.0
  %1102 = vmatprep.subr.mxu0 0.0
  %1103 = vmatpush2.msra.mxu0 0.0
  %1104 = vmatprep.subr.mxu0 0.0
  %1105 = vmatpush2.msra.mxu0 0.0
  %1106 = vmatprep.subr.mxu0 0.0
  %1107 = vmatpush2.msra.mxu0 0.0
  %1108 = vmatprep.subr.mxu0 0.0
  %1109 = vmatpush2.msra.mxu0 0.0
  %1110 = vmatprep.subr.mxu0 0.0
  %1111 = vmatpush2.msra.mxu0 0.0
  %1112 = vmatprep.subr.mxu0 0.0
  %1113 = vmatpush2.msra.mxu0 0.0
  %1114 = vmatprep.subr.mxu0 0.0
  %1115 = vmatpush2.msra.mxu0 0.0
  %1116 = vmatprep.subr.mxu0 0.0
  %1117 = vmatpush2.msra.mxu0 0.0
  %1118 = vmatprep.subr.mxu0 0.0
  %1119 = vmatpush2.msra.mxu0 0.0
  %1120 = vmatprep.subr.mxu0 0.0
  %1121 = vmatpush2.msra.mxu0 0.0
  %1122 = vmatprep.subr.mxu0 0.0
  %1123 = vmatpush2.msra.mxu0 0.0
  %1124 = vmatprep.subr.mxu0 0.0
  %1125 = vmatpush2.msra.mxu0 0.0
  %1126 = vmatprep.subr.mxu0 0.0
  %1127 = vmatpush2.msra.mxu0 0.0
  %1128 = vmatprep.subr.mxu0 0.0
  %1129 = vmatpush2.msra.mxu0 0.0
  %1130 = vmatprep.subr.mxu0 0.0
  %1131 = vmatpush2.msra.mxu0 0.0
  %1132 = vmatprep.mubr.f32.mxu0 0.0
  %1133 = vmatmul.mubr.f32.gmra.mxu0 %v1045
  %v1134 = vpop.f32.mrf.mxu0
  %v1135 = vadd.f32 %v1043, %v1134
  %v1136 = vpop.f32.mrf.mxu0
  %1137 = vmatprep.mubr.f32.mxu0 0.0
  %1138 = vmatmul.mubr.f32.gmra.mxu0 %v1048
  %v1139 = vpop.f32.mrf.mxu0
  %v1140 = vadd.f32 %v1043, %v1139
  %v1141 = vpop.f32.mrf.mxu0
  %1142 = vmatprep.mubr.f32.mxu0 0.0
  %1143 = vmatmul.mubr.f32.gmra.mxu0 %v1051
  %v1144 = vpop.f32.mrf.mxu0
  %v1145 = vadd.f32 %v1043, %v1144
  %v1146 = vpop.f32.mrf.mxu0
  %1147 = vmatprep.mubr.f32.mxu0 0.0
  %1148 = vmatmul.mubr.f32.gmra.mxu0 %v1054
  %v1149 = vpop.f32.mrf.mxu0
  %v1150 = vadd.f32 %v1043, %v1149
  %v1151 = vpop.f32.mrf.mxu0
  %1152 = vmatprep.mubr.f32.mxu0 0.0
  %1153 = vmatmul.mubr.f32.gmra.mxu0 %v1057
  %v1154 = vpop.f32.mrf.mxu0
  %v1155 = vadd.f32 %v1043, %v1154
  %v1156 = vpop.f32.mrf.mxu0
  %1157 = vmatprep.mubr.f32.mxu0 0.0
  %1158 = vmatmul.mubr.f32.gmra.mxu0 %v1060
  %v1159 = vpop.f32.mrf.mxu0
  %v1160 = vadd.f32 %v1043, %v1159
  %v1161 = vpop.f32.mrf.mxu0
  %1162 = vmatprep.mubr.f32.mxu0 0.0
  %1163 = vmatmul.mubr.f32.gmra.mxu0 %v1063
  %v1164 = vpop.f32.mrf.mxu0
  %v1165 = vadd.f32 %v1043, %v1164
  %v1166 = vpop.f32.mrf.mxu0
  %1167 = vmatprep.mubr.f32.mxu0 0.0
  %1168 = vmatmul.mubr.f32.gmra.mxu0 %v1066
  %v1169 = vpop.f32.mrf.mxu0
  %v1170 = vadd.f32 %v1043, %v1169
  %v1171 = vpop.f32.mrf.mxu0
  %1172 = vdwg.mxu0
  %1173 = vst.msk [vmem:[#allocation2] sm:$0xff] %vm170, %v1135
  %1174 = vst.msk [vmem:[#allocation2 + $0x8] sm:$0xff] %vm170, %v1140
  %1175 = vst.msk [vmem:[#allocation2 + $0x10] sm:$0xff] %vm170, %v1145
  %1176 = vst.msk [vmem:[#allocation2 + $0x18] sm:$0xff] %vm170, %v1150
  %1177 = vst.msk [vmem:[#allocation2 + $0x20] sm:$0xff] %vm170, %v1155
  %1178 = vst.msk [vmem:[#allocation2 + $0x28] sm:$0xff] %vm170, %v1160
  %1179 = vst.msk [vmem:[#allocation2 + $0x30] sm:$0xff] %vm170, %v1165
  %1180 = vst.msk [vmem:[#allocation2 + $0x38] sm:$0xff] %vm170, %v1170
  %s1181 = scalar_lea.vmem %s2, 32
  %v1182 = vld [vmem:[%s1181] sm:$0xff]
  %v1183 = vld [vmem:[%s1181 + $0x8] sm:$0xff]
  %v1184 = vld [vmem:[%s1181 + $0x10] sm:$0xff]
  %v1185 = vld [vmem:[%s1181 + $0x18] sm:$0xff]
  %s1186 = scalar_lea.vmem %s1, 8
  %v1187 = vld [vmem:[%s1186] sm:$0xff]
  %v1188 = vld [vmem:[#allocation2] sm:$0xff]
  %v1189 = vlaneseq
  %v1190 = vshrl.u32 %v1189, 7
  %v1191 = vsub.s32 1, %v1190
  %v1192 = vrot.slane %v1035, %v1191
  %v1194 = vsel %vm189, %v1187, 0
  %1196 = vmatprep.subr.mxu0 0.0
  %1197 = vmatpush1.msra.mxu0 0.0
  %1198 = vmatprep.subr.mxu0 0.0
  %1199 = vmatpush1.msra.mxu0 0.0
  %1200 = vmatprep.subr.mxu0 0.0
  %1201 = vmatpush1.msra.mxu0 0.0
  %1202 = vmatprep.subr.mxu0 0.0
  %1203 = vmatpush1.msra.mxu0 0.0
  %1204 = vmatprep.subr.mxu0 0.0
  %1205 = vmatpush1.msra.mxu0 0.0
  %1206 = vmatprep.subr.mxu0 0.0
  %1207 = vmatpush1.msra.mxu0 0.0
  %1208 = vmatprep.subr.mxu0 0.0
  %1209 = vmatpush1.msra.mxu0 0.0
  %1210 = vmatprep.subr.mxu0 0.0
  %1211 = vmatpush1.msra.mxu0 0.0
  %1212 = vmatprep.subr.mxu0 0.0
  %1213 = vmatpush1.msra.mxu0 0.0
  %1214 = vmatprep.subr.mxu0 0.0
  %1215 = vmatpush1.msra.mxu0 0.0
  %1216 = vmatprep.subr.mxu0 0.0
  %1217 = vmatpush1.msra.mxu0 0.0
  %1218 = vmatprep.subr.mxu0 0.0
  %1219 = vmatpush1.msra.mxu0 0.0
  %1220 = vmatprep.subr.mxu0 0.0
  %1221 = vmatpush1.msra.mxu0 %v1185
  %1222 = vmatprep.subr.mxu0 0.0
  %1223 = vmatpush1.msra.mxu0 %v1184
  %1224 = vmatprep.subr.mxu0 0.0
  %1225 = vmatpush1.msra.mxu0 %v1183
  %1226 = vmatprep.subr.mxu0 0.0
  %1227 = vmatpush1.msra.mxu0 %v1182
  %1228 = vmatprep.subr.mxu0 0.0
  %1229 = vmatpush2.msra.mxu0 0.0
  %1230 = vmatprep.subr.mxu0 0.0
  %1231 = vmatpush2.msra.mxu0 0.0
  %1232 = vmatprep.subr.mxu0 0.0
  %1233 = vmatpush2.msra.mxu0 0.0
  %1234 = vmatprep.subr.mxu0 0.0
  %1235 = vmatpush2.msra.mxu0 0.0
  %1236 = vmatprep.subr.mxu0 0.0
  %1237 = vmatpush2.msra.mxu0 0.0
  %1238 = vmatprep.subr.mxu0 0.0
  %1239 = vmatpush2.msra.mxu0 0.0
  %1240 = vmatprep.subr.mxu0 0.0
  %1241 = vmatpush2.msra.mxu0 0.0
  %1242 = vmatprep.subr.mxu0 0.0
  %1243 = vmatpush2.msra.mxu0 0.0
  %1244 = vmatprep.subr.mxu0 0.0
  %1245 = vmatpush2.msra.mxu0 0.0
  %1246 = vmatprep.subr.mxu0 0.0
  %1247 = vmatpush2.msra.mxu0 0.0
  %1248 = vmatprep.subr.mxu0 0.0
  %1249 = vmatpush2.msra.mxu0 0.0
  %1250 = vmatprep.subr.mxu0 0.0
  %1251 = vmatpush2.msra.mxu0 0.0
  %1252 = vmatprep.subr.mxu0 0.0
  %1253 = vmatpush2.msra.mxu0 0.0
  %1254 = vmatprep.subr.mxu0 0.0
  %1255 = vmatpush2.msra.mxu0 0.0
  %1256 = vmatprep.subr.mxu0 0.0
  %1257 = vmatpush2.msra.mxu0 0.0
  %1258 = vmatprep.subr.mxu0 0.0
  %1259 = vmatpush2.msra.mxu0 0.0
  %1260 = vmatprep.mubr.f32.mxu0 0.0
  %1261 = vmatmul.mubr.f32.gmra.mxu0 %v1194
  %v1262 = vpop.f32.mrf.mxu0
  %v1263 = vadd.f32 %v1192, %v1262
  %v1264 = vpop.f32.mrf.mxu0
  %1265 = vdwg.mxu0
  %v1266 = vadd.f32 %v1188, %v1263
  %v1267 = vxor.u32 %v1266, 2147483648
  %v1268 = vmul.f32 %v1267, 1.442695
  %v1269 = vpow.pop %v1268
  %v1270 = vadd.f32 %v1269, 1.0
  %v1271 = vrcp.pop %v1270
  %v1272 = vmul.f32 1.0, %v1271
  %1274 = vrot.lane.b32.xlu0 %v1263, 64
  %v1275 = vpop.permute.xlu0 %1274
  %v1277 = vmul.f32 %v1272, %v1275
  %1279 = vrot.lane.b32.xlu0 %v1277, 64
  %v1280 = vpop.permute.xlu0 %1279
  %v1282 = vadd.f32 %v1188, %v1280
  %v1283 = vtanh.pop %v1282
  %v1284 = vsub.f32 1.0, %v1272
  %1286 = vrot.lane.b32.xlu0 %v1283, 96
  %v1287 = vpop.permute.xlu0 %1286
  %v1289 = vmul.f32 %v1284, %v1287
  %1290 = vrot.lane.b32.xlu0 %v1187, 32
  %v1291 = vpop.permute.xlu0 %1290
  %v1293 = vmul.f32 %v1272, %v1291
  %v1294 = vadd.f32 %v1289, %v1293
  %1296 = vrot.lane.b32.xlu0 %v1294, 96
  %v1297 = vpop.permute.xlu0 %1296
  %1299 = vst.msk [vmem:[%s6] sm:$0xff] %vm189, %v1297
  %v1300 = vld [vmem:[#allocation2 + $0x8] sm:$0xff]
  %v1301 = vsel %vm189, %v1297, 0
  %1303 = vmatprep.subr.mxu0 0.0
  %1304 = vmatpush1.msra.mxu0 0.0
  %1305 = vmatprep.subr.mxu0 0.0
  %1306 = vmatpush1.msra.mxu0 0.0
  %1307 = vmatprep.subr.mxu0 0.0
  %1308 = vmatpush1.msra.mxu0 0.0
  %1309 = vmatprep.subr.mxu0 0.0
  %1310 = vmatpush1.msra.mxu0 0.0
  %1311 = vmatprep.subr.mxu0 0.0
  %1312 = vmatpush1.msra.mxu0 0.0
  %1313 = vmatprep.subr.mxu0 0.0
  %1314 = vmatpush1.msra.mxu0 0.0
  %1315 = vmatprep.subr.mxu0 0.0
  %1316 = vmatpush1.msra.mxu0 0.0
  %1317 = vmatprep.subr.mxu0 0.0
  %1318 = vmatpush1.msra.mxu0 0.0
  %1319 = vmatprep.subr.mxu0 0.0
  %1320 = vmatpush1.msra.mxu0 0.0
  %1321 = vmatprep.subr.mxu0 0.0
  %1322 = vmatpush1.msra.mxu0 0.0
  %1323 = vmatprep.subr.mxu0 0.0
  %1324 = vmatpush1.msra.mxu0 0.0
  %1325 = vmatprep.subr.mxu0 0.0
  %1326 = vmatpush1.msra.mxu0 0.0
  %1327 = vmatprep.subr.mxu0 0.0
  %1328 = vmatpush1.msra.mxu0 %v1185
  %1329 = vmatprep.subr.mxu0 0.0
  %1330 = vmatpush1.msra.mxu0 %v1184
  %1331 = vmatprep.subr.mxu0 0.0
  %1332 = vmatpush1.msra.mxu0 %v1183
  %1333 = vmatprep.subr.mxu0 0.0
  %1334 = vmatpush1.msra.mxu0 %v1182
  %1335 = vmatprep.subr.mxu0 0.0
  %1336 = vmatpush2.msra.mxu0 0.0
  %1337 = vmatprep.subr.mxu0 0.0
  %1338 = vmatpush2.msra.mxu0 0.0
  %1339 = vmatprep.subr.mxu0 0.0
  %1340 = vmatpush2.msra.mxu0 0.0
  %1341 = vmatprep.subr.mxu0 0.0
  %1342 = vmatpush2.msra.mxu0 0.0
  %1343 = vmatprep.subr.mxu0 0.0
  %1344 = vmatpush2.msra.mxu0 0.0
  %1345 = vmatprep.subr.mxu0 0.0
  %1346 = vmatpush2.msra.mxu0 0.0
  %1347 = vmatprep.subr.mxu0 0.0
  %1348 = vmatpush2.msra.mxu0 0.0
  %1349 = vmatprep.subr.mxu0 0.0
  %1350 = vmatpush2.msra.mxu0 0.0
  %1351 = vmatprep.subr.mxu0 0.0
  %1352 = vmatpush2.msra.mxu0 0.0
  %1353 = vmatprep.subr.mxu0 0.0
  %1354 = vmatpush2.msra.mxu0 0.0
  %1355 = vmatprep.subr.mxu0 0.0
  %1356 = vmatpush2.msra.mxu0 0.0
  %1357 = vmatprep.subr.mxu0 0.0
  %1358 = vmatpush2.msra.mxu0 0.0
  %1359 = vmatprep.subr.mxu0 0.0
  %1360 = vmatpush2.msra.mxu0 0.0
  %1361 = vmatprep.subr.mxu0 0.0
  %1362 = vmatpush2.msra.mxu0 0.0
  %1363 = vmatprep.subr.mxu0 0.0
  %1364 = vmatpush2.msra.mxu0 0.0
  %1365 = vmatprep.subr.mxu0 0.0
  %1366 = vmatpush2.msra.mxu0 0.0
  %1367 = vmatprep.mubr.f32.mxu0 0.0
  %1368 = vmatmul.mubr.f32.gmra.mxu0 %v1301
  %v1369 = vpop.f32.mrf.mxu0
  %v1370 = vadd.f32 %v1192, %v1369
  %v1371 = vpop.f32.mrf.mxu0
  %1372 = vdwg.mxu0
  %v1373 = vadd.f32 %v1300, %v1370
  %v1374 = vxor.u32 %v1373, 2147483648
  %v1375 = vmul.f32 %v1374, 1.442695
  %v1376 = vpow.pop %v1375
  %v1377 = vadd.f32 %v1376, 1.0
  %v1378 = vrcp.pop %v1377
  %v1379 = vmul.f32 1.0, %v1378
  %1381 = vrot.lane.b32.xlu0 %v1370, 64
  %v1382 = vpop.permute.xlu0 %1381
  %v1384 = vmul.f32 %v1379, %v1382
  %1386 = vrot.lane.b32.xlu0 %v1384, 64
  %v1387 = vpop.permute.xlu0 %1386
  %v1389 = vadd.f32 %v1300, %v1387
  %v1390 = vtanh.pop %v1389
  %v1391 = vsub.f32 1.0, %v1379
  %1393 = vrot.lane.b32.xlu0 %v1390, 96
  %v1394 = vpop.permute.xlu0 %1393
  %v1396 = vmul.f32 %v1391, %v1394
  %v1397 = vmul.f32 %v1379, %v1294
  %v1398 = vadd.f32 %v1396, %v1397
  %vm1399 = vcmask 523520
  %1400 = vst.msk [vmem:[%s6] sm:$0xff] %vm1399, %v1398
  %v1401 = vld [vmem:[#allocation2 + $0x10] sm:$0xff]
  %1403 = vrot.lane.b32.xlu0 %v1398, 96
  %v1404 = vpop.permute.xlu0 %1403
  %v1405 = vsel %vm189, %v1404, 0
  %1407 = vmatprep.subr.mxu0 0.0
  %1408 = vmatpush1.msra.mxu0 0.0
  %1409 = vmatprep.subr.mxu0 0.0
  %1410 = vmatpush1.msra.mxu0 0.0
  %1411 = vmatprep.subr.mxu0 0.0
  %1412 = vmatpush1.msra.mxu0 0.0
  %1413 = vmatprep.subr.mxu0 0.0
  %1414 = vmatpush1.msra.mxu0 0.0
  %1415 = vmatprep.subr.mxu0 0.0
  %1416 = vmatpush1.msra.mxu0 0.0
  %1417 = vmatprep.subr.mxu0 0.0
  %1418 = vmatpush1.msra.mxu0 0.0
  %1419 = vmatprep.subr.mxu0 0.0
  %1420 = vmatpush1.msra.mxu0 0.0
  %1421 = vmatprep.subr.mxu0 0.0
  %1422 = vmatpush1.msra.mxu0 0.0
  %1423 = vmatprep.subr.mxu0 0.0
  %1424 = vmatpush1.msra.mxu0 0.0
  %1425 = vmatprep.subr.mxu0 0.0
  %1426 = vmatpush1.msra.mxu0 0.0
  %1427 = vmatprep.subr.mxu0 0.0
  %1428 = vmatpush1.msra.mxu0 0.0
  %1429 = vmatprep.subr.mxu0 0.0
  %1430 = vmatpush1.msra.mxu0 0.0
  %1431 = vmatprep.subr.mxu0 0.0
  %1432 = vmatpush1.msra.mxu0 %v1185
  %1433 = vmatprep.subr.mxu0 0.0
  %1434 = vmatpush1.msra.mxu0 %v1184
  %1435 = vmatprep.subr.mxu0 0.0
  %1436 = vmatpush1.msra.mxu0 %v1183
  %1437 = vmatprep.subr.mxu0 0.0
  %1438 = vmatpush1.msra.mxu0 %v1182
  %1439 = vmatprep.subr.mxu0 0.0
  %1440 = vmatpush2.msra.mxu0 0.0
  %1441 = vmatprep.subr.mxu0 0.0
  %1442 = vmatpush2.msra.mxu0 0.0
  %1443 = vmatprep.subr.mxu0 0.0
  %1444 = vmatpush2.msra.mxu0 0.0
  %1445 = vmatprep.subr.mxu0 0.0
  %1446 = vmatpush2.msra.mxu0 0.0
  %1447 = vmatprep.subr.mxu0 0.0
  %1448 = vmatpush2.msra.mxu0 0.0
  %1449 = vmatprep.subr.mxu0 0.0
  %1450 = vmatpush2.msra.mxu0 0.0
  %1451 = vmatprep.subr.mxu0 0.0
  %1452 = vmatpush2.msra.mxu0 0.0
  %1453 = vmatprep.subr.mxu0 0.0
  %1454 = vmatpush2.msra.mxu0 0.0
  %1455 = vmatprep.subr.mxu0 0.0
  %1456 = vmatpush2.msra.mxu0 0.0
  %1457 = vmatprep.subr.mxu0 0.0
  %1458 = vmatpush2.msra.mxu0 0.0
  %1459 = vmatprep.subr.mxu0 0.0
  %1460 = vmatpush2.msra.mxu0 0.0
  %1461 = vmatprep.subr.mxu0 0.0
  %1462 = vmatpush2.msra.mxu0 0.0
  %1463 = vmatprep.subr.mxu0 0.0
  %1464 = vmatpush2.msra.mxu0 0.0
  %1465 = vmatprep.subr.mxu0 0.0
  %1466 = vmatpush2.msra.mxu0 0.0
  %1467 = vmatprep.subr.mxu0 0.0
  %1468 = vmatpush2.msra.mxu0 0.0
  %1469 = vmatprep.subr.mxu0 0.0
  %1470 = vmatpush2.msra.mxu0 0.0
  %1471 = vmatprep.mubr.f32.mxu0 0.0
  %1472 = vmatmul.mubr.f32.gmra.mxu0 %v1405
  %v1473 = vpop.f32.mrf.mxu0
  %v1474 = vadd.f32 %v1192, %v1473
  %v1475 = vpop.f32.mrf.mxu0
  %1476 = vdwg.mxu0
  %v1477 = vadd.f32 %v1401, %v1474
  %v1478 = vxor.u32 %v1477, 2147483648
  %v1479 = vmul.f32 %v1478, 1.442695
  %v1480 = vpow.pop %v1479
  %v1481 = vadd.f32 %v1480, 1.0
  %v1482 = vrcp.pop %v1481
  %v1483 = vmul.f32 1.0, %v1482
  %1485 = vrot.lane.b32.xlu0 %v1474, 64
  %v1486 = vpop.permute.xlu0 %1485
  %v1488 = vmul.f32 %v1483, %v1486
  %1490 = vrot.lane.b32.xlu0 %v1488, 64
  %v1491 = vpop.permute.xlu0 %1490
  %v1493 = vadd.f32 %v1401, %v1491
  %v1494 = vtanh.pop %v1493
  %v1495 = vsub.f32 1.0, %v1483
  %1497 = vrot.lane.b32.xlu0 %v1494, 96
  %v1498 = vpop.permute.xlu0 %1497
  %v1500 = vmul.f32 %v1495, %v1498
  %v1501 = vmul.f32 %v1483, %v1398
  %v1502 = vadd.f32 %v1500, %v1501
  %1504 = vrot.lane.b32.xlu0 %v1502, 32
  %v1505 = vpop.permute.xlu0 %1504
  %vm1507 = vcmask 785920
  %1508 = vst.msk [vmem:[%s6] sm:$0xff] %vm1507, %v1505
  %v1509 = vld [vmem:[#allocation2 + $0x18] sm:$0xff]
  %1510 = vrot.lane.b32.xlu0 %v1502, 96
  %v1511 = vpop.permute.xlu0 %1510
  %v1512 = vsel %vm189, %v1511, 0
  %1514 = vmatprep.subr.mxu0 0.0
  %1515 = vmatpush1.msra.mxu0 0.0
  %1516 = vmatprep.subr.mxu0 0.0
  %1517 = vmatpush1.msra.mxu0 0.0
  %1518 = vmatprep.subr.mxu0 0.0
  %1519 = vmatpush1.msra.mxu0 0.0
  %1520 = vmatprep.subr.mxu0 0.0
  %1521 = vmatpush1.msra.mxu0 0.0
  %1522 = vmatprep.subr.mxu0 0.0
  %1523 = vmatpush1.msra.mxu0 0.0
  %1524 = vmatprep.subr.mxu0 0.0
  %1525 = vmatpush1.msra.mxu0 0.0
  %1526 = vmatprep.subr.mxu0 0.0
  %1527 = vmatpush1.msra.mxu0 0.0
  %1528 = vmatprep.subr.mxu0 0.0
  %1529 = vmatpush1.msra.mxu0 0.0
  %1530 = vmatprep.subr.mxu0 0.0
  %1531 = vmatpush1.msra.mxu0 0.0
  %1532 = vmatprep.subr.mxu0 0.0
  %1533 = vmatpush1.msra.mxu0 0.0
  %1534 = vmatprep.subr.mxu0 0.0
  %1535 = vmatpush1.msra.mxu0 0.0
  %1536 = vmatprep.subr.mxu0 0.0
  %1537 = vmatpush1.msra.mxu0 0.0
  %1538 = vmatprep.subr.mxu0 0.0
  %1539 = vmatpush1.msra.mxu0 %v1185
  %1540 = vmatprep.subr.mxu0 0.0
  %1541 = vmatpush1.msra.mxu0 %v1184
  %1542 = vmatprep.subr.mxu0 0.0
  %1543 = vmatpush1.msra.mxu0 %v1183
  %1544 = vmatprep.subr.mxu0 0.0
  %1545 = vmatpush1.msra.mxu0 %v1182
  %1546 = vmatprep.subr.mxu0 0.0
  %1547 = vmatpush2.msra.mxu0 0.0
  %1548 = vmatprep.subr.mxu0 0.0
  %1549 = vmatpush2.msra.mxu0 0.0
  %1550 = vmatprep.subr.mxu0 0.0
  %1551 = vmatpush2.msra.mxu0 0.0
  %1552 = vmatprep.subr.mxu0 0.0
  %1553 = vmatpush2.msra.mxu0 0.0
  %1554 = vmatprep.subr.mxu0 0.0
  %1555 = vmatpush2.msra.mxu0 0.0
  %1556 = vmatprep.subr.mxu0 0.0
  %1557 = vmatpush2.msra.mxu0 0.0
  %1558 = vmatprep.subr.mxu0 0.0
  %1559 = vmatpush2.msra.mxu0 0.0
  %1560 = vmatprep.subr.mxu0 0.0
  %1561 = vmatpush2.msra.mxu0 0.0
  %1562 = vmatprep.subr.mxu0 0.0
  %1563 = vmatpush2.msra.mxu0 0.0
  %1564 = vmatprep.subr.mxu0 0.0
  %1565 = vmatpush2.msra.mxu0 0.0
  %1566 = vmatprep.subr.mxu0 0.0
  %1567 = vmatpush2.msra.mxu0 0.0
  %1568 = vmatprep.subr.mxu0 0.0
  %1569 = vmatpush2.msra.mxu0 0.0
  %1570 = vmatprep.subr.mxu0 0.0
  %1571 = vmatpush2.msra.mxu0 0.0
  %1572 = vmatprep.subr.mxu0 0.0
  %1573 = vmatpush2.msra.mxu0 0.0
  %1574 = vmatprep.subr.mxu0 0.0
  %1575 = vmatpush2.msra.mxu0 0.0
  %1576 = vmatprep.subr.mxu0 0.0
  %1577 = vmatpush2.msra.mxu0 0.0
  %1578 = vmatprep.mubr.f32.mxu0 0.0
  %1579 = vmatmul.mubr.f32.gmra.mxu0 %v1512
  %v1580 = vpop.f32.mrf.mxu0
  %v1581 = vadd.f32 %v1192, %v1580
  %v1582 = vpop.f32.mrf.mxu0
  %1583 = vdwg.mxu0
  %v1584 = vadd.f32 %v1509, %v1581
  %v1585 = vxor.u32 %v1584, 2147483648
  %v1586 = vmul.f32 %v1585, 1.442695
  %v1587 = vpow.pop %v1586
  %v1588 = vadd.f32 %v1587, 1.0
  %v1589 = vrcp.pop %v1588
  %v1590 = vmul.f32 1.0, %v1589
  %1592 = vrot.lane.b32.xlu0 %v1581, 64
  %v1593 = vpop.permute.xlu0 %1592
  %v1595 = vmul.f32 %v1590, %v1593
  %1597 = vrot.lane.b32.xlu0 %v1595, 64
  %v1598 = vpop.permute.xlu0 %1597
  %v1600 = vadd.f32 %v1509, %v1598
  %v1601 = vtanh.pop %v1600
  %v1602 = vsub.f32 1.0, %v1590
  %1604 = vrot.lane.b32.xlu0 %v1601, 96
  %v1605 = vpop.permute.xlu0 %1604
  %v1607 = vmul.f32 %v1602, %v1605
  %v1608 = vmul.f32 %v1590, %v1502
  %v1609 = vadd.f32 %v1607, %v1608
  %1611 = vrot.lane.b32.xlu0 %v1609, 64
  %v1612 = vpop.permute.xlu0 %1611
  %vm1614 = vcmask 1048320
  %1615 = vst.msk [vmem:[%s6] sm:$0xff] %vm1614, %v1612
  %v1616 = vld [vmem:[#allocation2 + $0x20] sm:$0xff]
  %1617 = vrot.lane.b32.xlu0 %v1609, 96
  %v1618 = vpop.permute.xlu0 %1617
  %v1619 = vsel %vm189, %v1618, 0
  %1621 = vmatprep.subr.mxu0 0.0
  %1622 = vmatpush1.msra.mxu0 0.0
  %1623 = vmatprep.subr.mxu0 0.0
  %1624 = vmatpush1.msra.mxu0 0.0
  %1625 = vmatprep.subr.mxu0 0.0
  %1626 = vmatpush1.msra.mxu0 0.0
  %1627 = vmatprep.subr.mxu0 0.0
  %1628 = vmatpush1.msra.mxu0 0.0
  %1629 = vmatprep.subr.mxu0 0.0
  %1630 = vmatpush1.msra.mxu0 0.0
  %1631 = vmatprep.subr.mxu0 0.0
  %1632 = vmatpush1.msra.mxu0 0.0
  %1633 = vmatprep.subr.mxu0 0.0
  %1634 = vmatpush1.msra.mxu0 0.0
  %1635 = vmatprep.subr.mxu0 0.0
  %1636 = vmatpush1.msra.mxu0 0.0
  %1637 = vmatprep.subr.mxu0 0.0
  %1638 = vmatpush1.msra.mxu0 0.0
  %1639 = vmatprep.subr.mxu0 0.0
  %1640 = vmatpush1.msra.mxu0 0.0
  %1641 = vmatprep.subr.mxu0 0.0
  %1642 = vmatpush1.msra.mxu0 0.0
  %1643 = vmatprep.subr.mxu0 0.0
  %1644 = vmatpush1.msra.mxu0 0.0
  %1645 = vmatprep.subr.mxu0 0.0
  %1646 = vmatpush1.msra.mxu0 %v1185
  %1647 = vmatprep.subr.mxu0 0.0
  %1648 = vmatpush1.msra.mxu0 %v1184
  %1649 = vmatprep.subr.mxu0 0.0
  %1650 = vmatpush1.msra.mxu0 %v1183
  %1651 = vmatprep.subr.mxu0 0.0
  %1652 = vmatpush1.msra.mxu0 %v1182
  %1653 = vmatprep.subr.mxu0 0.0
  %1654 = vmatpush2.msra.mxu0 0.0
  %1655 = vmatprep.subr.mxu0 0.0
  %1656 = vmatpush2.msra.mxu0 0.0
  %1657 = vmatprep.subr.mxu0 0.0
  %1658 = vmatpush2.msra.mxu0 0.0
  %1659 = vmatprep.subr.mxu0 0.0
  %1660 = vmatpush2.msra.mxu0 0.0
  %1661 = vmatprep.subr.mxu0 0.0
  %1662 = vmatpush2.msra.mxu0 0.0
  %1663 = vmatprep.subr.mxu0 0.0
  %1664 = vmatpush2.msra.mxu0 0.0
  %1665 = vmatprep.subr.mxu0 0.0
  %1666 = vmatpush2.msra.mxu0 0.0
  %1667 = vmatprep.subr.mxu0 0.0
  %1668 = vmatpush2.msra.mxu0 0.0
  %1669 = vmatprep.subr.mxu0 0.0
  %1670 = vmatpush2.msra.mxu0 0.0
  %1671 = vmatprep.subr.mxu0 0.0
  %1672 = vmatpush2.msra.mxu0 0.0
  %1673 = vmatprep.subr.mxu0 0.0
  %1674 = vmatpush2.msra.mxu0 0.0
  %1675 = vmatprep.subr.mxu0 0.0
  %1676 = vmatpush2.msra.mxu0 0.0
  %1677 = vmatprep.subr.mxu0 0.0
  %1678 = vmatpush2.msra.mxu0 0.0
  %1679 = vmatprep.subr.mxu0 0.0
  %1680 = vmatpush2.msra.mxu0 0.0
  %1681 = vmatprep.subr.mxu0 0.0
  %1682 = vmatpush2.msra.mxu0 0.0
  %1683 = vmatprep.subr.mxu0 0.0
  %1684 = vmatpush2.msra.mxu0 0.0
  %1685 = vmatprep.mubr.f32.mxu0 0.0
  %1686 = vmatmul.mubr.f32.gmra.mxu0 %v1619
  %v1687 = vpop.f32.mrf.mxu0
  %v1688 = vadd.f32 %v1192, %v1687
  %v1689 = vpop.f32.mrf.mxu0
  %1690 = vdwg.mxu0
  %v1691 = vadd.f32 %v1616, %v1688
  %v1692 = vxor.u32 %v1691, 2147483648
  %v1693 = vmul.f32 %v1692, 1.442695
  %v1694 = vpow.pop %v1693
  %v1695 = vadd.f32 %v1694, 1.0
  %v1696 = vrcp.pop %v1695
  %v1697 = vmul.f32 1.0, %v1696
  %1699 = vrot.lane.b32.xlu0 %v1688, 64
  %v1700 = vpop.permute.xlu0 %1699
  %v1702 = vmul.f32 %v1697, %v1700
  %1704 = vrot.lane.b32.xlu0 %v1702, 64
  %v1705 = vpop.permute.xlu0 %1704
  %v1707 = vadd.f32 %v1616, %v1705
  %v1708 = vtanh.pop %v1707
  %v1709 = vsub.f32 1.0, %v1697
  %1711 = vrot.lane.b32.xlu0 %v1708, 96
  %v1712 = vpop.permute.xlu0 %1711
  %v1714 = vmul.f32 %v1709, %v1712
  %v1715 = vmul.f32 %v1697, %v1609
  %v1716 = vadd.f32 %v1714, %v1715
  %1718 = vrot.lane.b32.xlu0 %v1716, 96
  %v1719 = vpop.permute.xlu0 %1718
  %1721 = vst.msk [vmem:[%s6 + $0x8] sm:$0xff] %vm189, %v1719
  %v1722 = vld [vmem:[#allocation2 + $0x28] sm:$0xff]
  %v1723 = vsel %vm189, %v1719, 0
  %1725 = vmatprep.subr.mxu0 0.0
  %1726 = vmatpush1.msra.mxu0 0.0
  %1727 = vmatprep.subr.mxu0 0.0
  %1728 = vmatpush1.msra.mxu0 0.0
  %1729 = vmatprep.subr.mxu0 0.0
  %1730 = vmatpush1.msra.mxu0 0.0
  %1731 = vmatprep.subr.mxu0 0.0
  %1732 = vmatpush1.msra.mxu0 0.0
  %1733 = vmatprep.subr.mxu0 0.0
  %1734 = vmatpush1.msra.mxu0 0.0
  %1735 = vmatprep.subr.mxu0 0.0
  %1736 = vmatpush1.msra.mxu0 0.0
  %1737 = vmatprep.subr.mxu0 0.0
  %1738 = vmatpush1.msra.mxu0 0.0
  %1739 = vmatprep.subr.mxu0 0.0
  %1740 = vmatpush1.msra.mxu0 0.0
  %1741 = vmatprep.subr.mxu0 0.0
  %1742 = vmatpush1.msra.mxu0 0.0
  %1743 = vmatprep.subr.mxu0 0.0
  %1744 = vmatpush1.msra.mxu0 0.0
  %1745 = vmatprep.subr.mxu0 0.0
  %1746 = vmatpush1.msra.mxu0 0.0
  %1747 = vmatprep.subr.mxu0 0.0
  %1748 = vmatpush1.msra.mxu0 0.0
  %1749 = vmatprep.subr.mxu0 0.0
  %1750 = vmatpush1.msra.mxu0 %v1185
  %1751 = vmatprep.subr.mxu0 0.0
  %1752 = vmatpush1.msra.mxu0 %v1184
  %1753 = vmatprep.subr.mxu0 0.0
  %1754 = vmatpush1.msra.mxu0 %v1183
  %1755 = vmatprep.subr.mxu0 0.0
  %1756 = vmatpush1.msra.mxu0 %v1182
  %1757 = vmatprep.subr.mxu0 0.0
  %1758 = vmatpush2.msra.mxu0 0.0
  %1759 = vmatprep.subr.mxu0 0.0
  %1760 = vmatpush2.msra.mxu0 0.0
  %1761 = vmatprep.subr.mxu0 0.0
  %1762 = vmatpush2.msra.mxu0 0.0
  %1763 = vmatprep.subr.mxu0 0.0
  %1764 = vmatpush2.msra.mxu0 0.0
  %1765 = vmatprep.subr.mxu0 0.0
  %1766 = vmatpush2.msra.mxu0 0.0
  %1767 = vmatprep.subr.mxu0 0.0
  %1768 = vmatpush2.msra.mxu0 0.0
  %1769 = vmatprep.subr.mxu0 0.0
  %1770 = vmatpush2.msra.mxu0 0.0
  %1771 = vmatprep.subr.mxu0 0.0
  %1772 = vmatpush2.msra.mxu0 0.0
  %1773 = vmatprep.subr.mxu0 0.0
  %1774 = vmatpush2.msra.mxu0 0.0
  %1775 = vmatprep.subr.mxu0 0.0
  %1776 = vmatpush2.msra.mxu0 0.0
  %1777 = vmatprep.subr.mxu0 0.0
  %1778 = vmatpush2.msra.mxu0 0.0
  %1779 = vmatprep.subr.mxu0 0.0
  %1780 = vmatpush2.msra.mxu0 0.0
  %1781 = vmatprep.subr.mxu0 0.0
  %1782 = vmatpush2.msra.mxu0 0.0
  %1783 = vmatprep.subr.mxu0 0.0
  %1784 = vmatpush2.msra.mxu0 0.0
  %1785 = vmatprep.subr.mxu0 0.0
  %1786 = vmatpush2.msra.mxu0 0.0
  %1787 = vmatprep.subr.mxu0 0.0
  %1788 = vmatpush2.msra.mxu0 0.0
  %1789 = vmatprep.mubr.f32.mxu0 0.0
  %1790 = vmatmul.mubr.f32.gmra.mxu0 %v1723
  %v1791 = vpop.f32.mrf.mxu0
  %v1792 = vadd.f32 %v1192, %v1791
  %v1793 = vpop.f32.mrf.mxu0
  %1794 = vdwg.mxu0
  %v1795 = vadd.f32 %v1722, %v1792
  %v1796 = vxor.u32 %v1795, 2147483648
  %v1797 = vmul.f32 %v1796, 1.442695
  %v1798 = vpow.pop %v1797
  %v1799 = vadd.f32 %v1798, 1.0
  %v1800 = vrcp.pop %v1799
  %v1801 = vmul.f32 1.0, %v1800
  %1803 = vrot.lane.b32.xlu0 %v1792, 64
  %v1804 = vpop.permute.xlu0 %1803
  %v1806 = vmul.f32 %v1801, %v1804
  %1808 = vrot.lane.b32.xlu0 %v1806, 64
  %v1809 = vpop.permute.xlu0 %1808
  %v1811 = vadd.f32 %v1722, %v1809
  %v1812 = vtanh.pop %v1811
  %v1813 = vsub.f32 1.0, %v1801
  %1815 = vrot.lane.b32.xlu0 %v1812, 96
  %v1816 = vpop.permute.xlu0 %1815
  %v1818 = vmul.f32 %v1813, %v1816
  %v1819 = vmul.f32 %v1801, %v1716
  %v1820 = vadd.f32 %v1818, %v1819
  %1821 = vst.msk [vmem:[%s6 + $0x8] sm:$0xff] %vm1399, %v1820
  %v1822 = vld [vmem:[#allocation2 + $0x30] sm:$0xff]
  %1824 = vrot.lane.b32.xlu0 %v1820, 96
  %v1825 = vpop.permute.xlu0 %1824
  %v1826 = vsel %vm189, %v1825, 0
  %1828 = vmatprep.subr.mxu0 0.0
  %1829 = vmatpush1.msra.mxu0 0.0
  %1830 = vmatprep.subr.mxu0 0.0
  %1831 = vmatpush1.msra.mxu0 0.0
  %1832 = vmatprep.subr.mxu0 0.0
  %1833 = vmatpush1.msra.mxu0 0.0
  %1834 = vmatprep.subr.mxu0 0.0
  %1835 = vmatpush1.msra.mxu0 0.0
  %1836 = vmatprep.subr.mxu0 0.0
  %1837 = vmatpush1.msra.mxu0 0.0
  %1838 = vmatprep.subr.mxu0 0.0
  %1839 = vmatpush1.msra.mxu0 0.0
  %1840 = vmatprep.subr.mxu0 0.0
  %1841 = vmatpush1.msra.mxu0 0.0
  %1842 = vmatprep.subr.mxu0 0.0
  %1843 = vmatpush1.msra.mxu0 0.0
  %1844 = vmatprep.subr.mxu0 0.0
  %1845 = vmatpush1.msra.mxu0 0.0
  %1846 = vmatprep.subr.mxu0 0.0
  %1847 = vmatpush1.msra.mxu0 0.0
  %1848 = vmatprep.subr.mxu0 0.0
  %1849 = vmatpush1.msra.mxu0 0.0
  %1850 = vmatprep.subr.mxu0 0.0
  %1851 = vmatpush1.msra.mxu0 0.0
  %1852 = vmatprep.subr.mxu0 0.0
  %1853 = vmatpush1.msra.mxu0 %v1185
  %1854 = vmatprep.subr.mxu0 0.0
  %1855 = vmatpush1.msra.mxu0 %v1184
  %1856 = vmatprep.subr.mxu0 0.0
  %1857 = vmatpush1.msra.mxu0 %v1183
  %1858 = vmatprep.subr.mxu0 0.0
  %1859 = vmatpush1.msra.mxu0 %v1182
  %1860 = vmatprep.subr.mxu0 0.0
  %1861 = vmatpush2.msra.mxu0 0.0
  %1862 = vmatprep.subr.mxu0 0.0
  %1863 = vmatpush2.msra.mxu0 0.0
  %1864 = vmatprep.subr.mxu0 0.0
  %1865 = vmatpush2.msra.mxu0 0.0
  %1866 = vmatprep.subr.mxu0 0.0
  %1867 = vmatpush2.msra.mxu0 0.0
  %1868 = vmatprep.subr.mxu0 0.0
  %1869 = vmatpush2.msra.mxu0 0.0
  %1870 = vmatprep.subr.mxu0 0.0
  %1871 = vmatpush2.msra.mxu0 0.0
  %1872 = vmatprep.subr.mxu0 0.0
  %1873 = vmatpush2.msra.mxu0 0.0
  %1874 = vmatprep.subr.mxu0 0.0
  %1875 = vmatpush2.msra.mxu0 0.0
  %1876 = vmatprep.subr.mxu0 0.0
  %1877 = vmatpush2.msra.mxu0 0.0
  %1878 = vmatprep.subr.mxu0 0.0
  %1879 = vmatpush2.msra.mxu0 0.0
  %1880 = vmatprep.subr.mxu0 0.0
  %1881 = vmatpush2.msra.mxu0 0.0
  %1882 = vmatprep.subr.mxu0 0.0
  %1883 = vmatpush2.msra.mxu0 0.0
  %1884 = vmatprep.subr.mxu0 0.0
  %1885 = vmatpush2.msra.mxu0 0.0
  %1886 = vmatprep.subr.mxu0 0.0
  %1887 = vmatpush2.msra.mxu0 0.0
  %1888 = vmatprep.subr.mxu0 0.0
  %1889 = vmatpush2.msra.mxu0 0.0
  %1890 = vmatprep.subr.mxu0 0.0
  %1891 = vmatpush2.msra.mxu0 0.0
  %1892 = vmatprep.mubr.f32.mxu0 0.0
  %1893 = vmatmul.mubr.f32.gmra.mxu0 %v1826
  %v1894 = vpop.f32.mrf.mxu0
  %v1895 = vadd.f32 %v1192, %v1894
  %v1896 = vpop.f32.mrf.mxu0
  %1897 = vdwg.mxu0
  %v1898 = vadd.f32 %v1822, %v1895
  %v1899 = vxor.u32 %v1898, 2147483648
  %v1900 = vmul.f32 %v1899, 1.442695
  %v1901 = vpow.pop %v1900
  %v1902 = vadd.f32 %v1901, 1.0
  %v1903 = vrcp.pop %v1902
  %v1904 = vmul.f32 1.0, %v1903
  %1906 = vrot.lane.b32.xlu0 %v1895, 64
  %v1907 = vpop.permute.xlu0 %1906
  %v1909 = vmul.f32 %v1904, %v1907
  %1911 = vrot.lane.b32.xlu0 %v1909, 64
  %v1912 = vpop.permute.xlu0 %1911
  %v1914 = vadd.f32 %v1822, %v1912
  %v1915 = vtanh.pop %v1914
  %v1916 = vsub.f32 1.0, %v1904
  %1918 = vrot.lane.b32.xlu0 %v1915, 96
  %v1919 = vpop.permute.xlu0 %1918
  %v1921 = vmul.f32 %v1916, %v1919
  %v1922 = vmul.f32 %v1904, %v1820
  %v1923 = vadd.f32 %v1921, %v1922
  %1925 = vrot.lane.b32.xlu0 %v1923, 32
  %v1926 = vpop.permute.xlu0 %1925
  %1928 = vst.msk [vmem:[%s6 + $0x8] sm:$0xff] %vm1507, %v1926
  %v1929 = vld [vmem:[#allocation2 + $0x38] sm:$0xff]
  %1930 = vrot.lane.b32.xlu0 %v1923, 96
  %v1931 = vpop.permute.xlu0 %1930
  %v1932 = vsel %vm189, %v1931, 0
  %1934 = vmatprep.subr.mxu0 0.0
  %1935 = vmatpush1.msra.mxu0 0.0
  %1936 = vmatprep.subr.mxu0 0.0
  %1937 = vmatpush1.msra.mxu0 0.0
  %1938 = vmatprep.subr.mxu0 0.0
  %1939 = vmatpush1.msra.mxu0 0.0
  %1940 = vmatprep.subr.mxu0 0.0
  %1941 = vmatpush1.msra.mxu0 0.0
  %1942 = vmatprep.subr.mxu0 0.0
  %1943 = vmatpush1.msra.mxu0 0.0
  %1944 = vmatprep.subr.mxu0 0.0
  %1945 = vmatpush1.msra.mxu0 0.0
  %1946 = vmatprep.subr.mxu0 0.0
  %1947 = vmatpush1.msra.mxu0 0.0
  %1948 = vmatprep.subr.mxu0 0.0
  %1949 = vmatpush1.msra.mxu0 0.0
  %1950 = vmatprep.subr.mxu0 0.0
  %1951 = vmatpush1.msra.mxu0 0.0
  %1952 = vmatprep.subr.mxu0 0.0
  %1953 = vmatpush1.msra.mxu0 0.0
  %1954 = vmatprep.subr.mxu0 0.0
  %1955 = vmatpush1.msra.mxu0 0.0
  %1956 = vmatprep.subr.mxu0 0.0
  %1957 = vmatpush1.msra.mxu0 0.0
  %1958 = vmatprep.subr.mxu0 0.0
  %1959 = vmatpush1.msra.mxu0 %v1185
  %1960 = vmatprep.subr.mxu0 0.0
  %1961 = vmatpush1.msra.mxu0 %v1184
  %1962 = vmatprep.subr.mxu0 0.0
  %1963 = vmatpush1.msra.mxu0 %v1183
  %1964 = vmatprep.subr.mxu0 0.0
  %1965 = vmatpush1.msra.mxu0 %v1182
  %1966 = vmatprep.subr.mxu0 0.0
  %1967 = vmatpush2.msra.mxu0 0.0
  %1968 = vmatprep.subr.mxu0 0.0
  %1969 = vmatpush2.msra.mxu0 0.0
  %1970 = vmatprep.subr.mxu0 0.0
  %1971 = vmatpush2.msra.mxu0 0.0
  %1972 = vmatprep.subr.mxu0 0.0
  %1973 = vmatpush2.msra.mxu0 0.0
  %1974 = vmatprep.subr.mxu0 0.0
  %1975 = vmatpush2.msra.mxu0 0.0
  %1976 = vmatprep.subr.mxu0 0.0
  %1977 = vmatpush2.msra.mxu0 0.0
  %1978 = vmatprep.subr.mxu0 0.0
  %1979 = vmatpush2.msra.mxu0 0.0
  %1980 = vmatprep.subr.mxu0 0.0
  %1981 = vmatpush2.msra.mxu0 0.0
  %1982 = vmatprep.subr.mxu0 0.0
  %1983 = vmatpush2.msra.mxu0 0.0
  %1984 = vmatprep.subr.mxu0 0.0
  %1985 = vmatpush2.msra.mxu0 0.0
  %1986 = vmatprep.subr.mxu0 0.0
  %1987 = vmatpush2.msra.mxu0 0.0
  %1988 = vmatprep.subr.mxu0 0.0
  %1989 = vmatpush2.msra.mxu0 0.0
  %1990 = vmatprep.subr.mxu0 0.0
  %1991 = vmatpush2.msra.mxu0 0.0
  %1992 = vmatprep.subr.mxu0 0.0
  %1993 = vmatpush2.msra.mxu0 0.0
  %1994 = vmatprep.subr.mxu0 0.0
  %1995 = vmatpush2.msra.mxu0 0.0
  %1996 = vmatprep.subr.mxu0 0.0
  %1997 = vmatpush2.msra.mxu0 0.0
  %1998 = vmatprep.mubr.f32.mxu0 0.0
  %1999 = vmatmul.mubr.f32.gmra.mxu0 %v1932
  %v2000 = vpop.f32.mrf.mxu0
  %v2001 = vadd.f32 %v1192, %v2000
  %v2002 = vpop.f32.mrf.mxu0
  %2003 = vdwg.mxu0
  %v2004 = vadd.f32 %v1929, %v2001
  %v2005 = vxor.u32 %v2004, 2147483648
  %v2006 = vmul.f32 %v2005, 1.442695
  %v2007 = vpow.pop %v2006
  %v2008 = vadd.f32 %v2007, 1.0
  %v2009 = vrcp.pop %v2008
  %v2010 = vmul.f32 1.0, %v2009
  %2012 = vrot.lane.b32.xlu0 %v2001, 64
  %v2013 = vpop.permute.xlu0 %2012
  %v2015 = vmul.f32 %v2010, %v2013
  %2017 = vrot.lane.b32.xlu0 %v2015, 64
  %v2018 = vpop.permute.xlu0 %2017
  %v2020 = vadd.f32 %v1929, %v2018
  %v2021 = vtanh.pop %v2020
  %v2022 = vsub.f32 1.0, %v2010
  %2024 = vrot.lane.b32.xlu0 %v2021, 96
  %v2025 = vpop.permute.xlu0 %2024
  %v2027 = vmul.f32 %v2022, %v2025
  %v2028 = vmul.f32 %v2010, %v1923
  %v2029 = vadd.f32 %v2027, %v2028
  %2031 = vrot.lane.b32.xlu0 %v2029, 64
  %v2032 = vpop.permute.xlu0 %2031
  %2034 = vst.msk [vmem:[%s6 + $0x8] sm:$0xff] %vm1614, %v2032
  %2035 = vrot.lane.b32.xlu0 %v2029, 96
  %v2036 = vpop.permute.xlu0 %2035
  %s2038 = scalar_lea.vmem %s7, 8
  %2039 = vst.msk [vmem:[%s2038] sm:$0xff] %vm189, %v2036
  // Predicated region
  $region26: #{_gru_forward.1} parent=0 // pred_check
    _
  $region27: #{_gru_forward.1} parent=0 // pred_check_branch
    %2041 = sbr.rel (0) target = $region29
  $region28: #{_gru_forward.1} parent=0 // pred_region
    _
  $region29: #{_gru_forward.1} parent=0 // pred_fallthru
    _
  // Predicated region
  $region30: #{_gru_forward.1} parent=0 // pred_check
    _
  $region31: #{_gru_forward.1} parent=0 // pred_check_branch
    %2043 = sbr.rel (0) target = $region33
  $region32: #{_gru_forward.1} parent=0 // pred_region
    _
  $region33: #{_gru_forward.1} parent=0 // pred_fallthru
    _
  // Predicated region
  $region34: #{_gru_forward.1} parent=0 // pred_check
    _
  $region35: #{_gru_forward.1} parent=0 // pred_check_branch
    %2045 = sbr.rel (0) target = $region37
  $region36: #{_gru_forward.1} parent=0 // pred_region
    _
  $region37: #{_gru_forward.1} parent=0 // pred_fallthru
    _
  // Predicated region
  $region38: #{_gru_forward.1} parent=0 // pred_check
    _
  $region39: #{_gru_forward.1} parent=0 // pred_check_branch
    %2047 = sbr.rel (0) target = $region41
  $region40: #{_gru_forward.1} parent=0 // pred_region
    _
  $region41: #{_gru_forward.1} parent=0 // pred_fallthru
    _

</llo_original>
